<compile_context>
chip_gen: v5e
topology: v5e:2x2
jax: 0.10.0
libtpu: 0.0.40
codegen_flags: <defaults>
</compile_context>

<pallas_src>
import math

import jax
import jax.numpy as jnp
from jax import lax
from jax.experimental import pallas as pl
from jax.experimental.pallas import tpu as pltpu

# Prior hyper-parameters (match the PyTorch module)
PI = 0.5
SIGMA_1 = math.exp(-0.0)
SIGMA_2 = math.exp(-6.0)
LOG_SQRT_2PI = 0.5 * math.log(2.0 * math.pi)

# Constants for the log-domain scale-mixture prior (folded at trace time).
_A1 = -(LOG_SQRT_2PI + math.log(SIGMA_1))
_INV_2S1 = 0.5 / (SIGMA_1 * SIGMA_1)
_DELTA_C = math.log(SIGMA_1) - math.log(SIGMA_2)                    # = 6
_DELTA_Q = 0.5 / (SIGMA_1 * SIGMA_1) - 0.5 / (SIGMA_2 * SIGMA_2)    # = 0.5*(1 - e^12)
_LOG_PI_MIX = math.log(PI)
_RATIO = (1.0 - PI) / PI


def _round_up(x, m):
    return ((x + m - 1) // m) * m


def _pick_tile(dim, cap):
    """Largest multiple-of-128 tile <= cap that evenly divides the 128-padded dim."""
    padded = _round_up(dim, 128)
    t = min(cap, padded)
    while padded % t:
        t -= 128
    return t, padded


def _softplus(v):
    # Numerically stable: max(v, 0) + log1p(exp(-|v|))
    return jnp.maximum(v, 0.0) + jnp.log1p(jnp.exp(-jnp.abs(v)))


def _mixture_logprob(v):
    # log(pi*N(v;0,s1) + (1-pi)*N(v;0,s2)) in log domain: one exp + one log1p per element.
    vsq = v * v
    return (_LOG_PI_MIX + _A1 - vsq * _INV_2S1
            + jnp.log1p(_RATIO * jnp.exp(_DELTA_C + vsq * _DELTA_Q)))


def _tree_sum(parts):
    """Pairwise (log-depth) sum of a list of equal-shaped arrays."""
    while len(parts) > 1:
        nxt = [a + b for a, b in zip(parts[0::2], parts[1::2])]
        if len(parts) % 2:
            nxt.append(parts[-1])
        parts = nxt
    return parts[0]


def _fold_to_vreg(v):
    """(R, C) -> (8, 128) partial sums using only elementwise VPU adds (tree, not chain)."""
    r, c = v.shape
    lanes = _tree_sum([v[:, j * 128:(j + 1) * 128] for j in range(c // 128)])
    return _tree_sum([lanes[s * 8:(s + 1) * 8, :] for s in range(r // 8)])


def _make_kernel(*, sample, out_f, in_f, to, tk, n_k, x_resident,
                 pad_rows, pad_cols, mm_dtype):
    def kernel(x_ref, wmu_ref, wrho_ref, *rest):
        if sample:
            weps_ref, b_ref, y_ref, lp_ref, lq_ref = rest
        else:
            b_ref, y_ref, lp_ref, lq_ref = rest

        bt = pl.program_id(0)   # batch tile        (parallel)
        i = pl.program_id(1)    # out-feature tile  (parallel)
        k = pl.program_id(2)    # in-feature tile   (reduction, arbitrary)

        @pl.when(k == 0)
        def _init():
            y_ref[...] = jnp.zeros_like(y_ref)
            lp_ref[...] = jnp.zeros_like(lp_ref)
            lq_ref[...] = jnp.zeros_like(lq_ref)

        wmu = wmu_ref[...]
        if sample:
            wsigma = _softplus(wrho_ref[...])
            weps = weps_ref[...]
            w = wmu + wsigma * weps            # reparameterized sample (f32)
        else:
            w = wmu

        # Weight log-prob partial sums are independent of the batch axis -> only bt == 0
        # accumulates them; other batch tiles leave their (zero-initialized) blocks untouched.
        # TODO(synk): for n_b > 1 the sampled W tile is still recomputed per batch tile; a
        # separate W-materialization pass would save that EUP work for very large batches.
        @pl.when(bt == 0)
        def _weight_logprobs():
            if sample:
                sig = wsigma
                quad = 0.5 * (weps * weps)     # == (W - mu)^2 / (2 sigma^2)
            else:
                sig = _softplus(wrho_ref[...])
                quad = 0.0
            logq_el = -LOG_SQRT_2PI - jnp.log(sig) - quad
            logp_el = _mixture_logprob(w)
            # Mask padded rows/cols out of the log-prob reductions (the matmul needs no mask:
            # padded x columns / eps entries are zero, padded out rows are sliced off outside).
            if pad_rows or pad_cols:
                valid = None
                if pad_rows:
                    rows = i * to + lax.broadcasted_iota(jnp.int32, (to, tk), 0)
                    valid = rows < out_f
                if pad_cols:
                    cols = k * tk + lax.broadcasted_iota(jnp.int32, (to, tk), 1)
                    cvalid = cols < in_f
                    valid = cvalid if valid is None else (valid & cvalid)
                logq_el = jnp.where(valid, logq_el, 0.0)
                logp_el = jnp.where(valid, logp_el, 0.0)
            lp_ref[...] += _fold_to_vreg(logp_el)
            lq_ref[...] += _fold_to_vreg(logq_el)

        # y_tile += x_tile @ W_tile.T  -- bf16 operands, f32 accumulate, contract dim1 x dim1
        # (no transpose materialized).
        if x_resident:
            x_tile = x_ref[k]                  # (tb, tk) slice of the K-resident x block
        else:
            x_tile = x_ref[...]
        y_ref[...] += lax.dot_general(
            x_tile, w.astype(mm_dtype),
            dimension_numbers=(((1,), (1,)), ((), ())),
            preferred_element_type=jnp.float32)

        @pl.when(k == n_k - 1)
        def _finalize():
            y_ref[...] += b_ref[...]           # broadcast sampled bias (1, to) over batch rows

    return kernel


def bayesian_linear_forward(x, weight_mu, weight_rho, bias_mu, bias_rho, *,
                            key=None, sample=True, mm_dtype=jnp.bfloat16,
                            to_cap=512, tk_cap=256, tb_cap=256,
                            x_resident_bytes=2 * 1024 * 1024):
    """BayesianLinear forward. Returns (y, log_p, log_q).

    sample=False (eval mode) uses W = weight_mu, b = bias_mu exactly as the PyTorch module.
    """
    x = jnp.asarray(x, jnp.float32)
    weight_mu = jnp.asarray(weight_mu, jnp.float32)
    weight_rho = jnp.asarray(weight_rho, jnp.float32)
    bias_mu = jnp.asarray(bias_mu, jnp.float32)
    bias_rho = jnp.asarray(bias_rho, jnp.float32)

    batch, in_f = x.shape
    out_f = weight_mu.shape[0]

    # Lane-dense tiles; defaults sized so double-buffered streams + temporaries stay under the
    # 16 MiB v5e scoped-VMEM default (and comfortably under v6e/v7x defaults).
    to, o_p = _pick_tile(out_f, to_cap)
    tk, k_p = _pick_tile(in_f, tk_cap)
    n_i, n_k = o_p // to, k_p // tk

    b8 = _round_up(batch, 8)
    tb = b8 if b8 <= tb_cap else tb_cap
    b_p = _round_up(b8, tb)
    n_b = b_p // tb
    # TODO(synk): on v7x (2 TCs) with n_b == n_i == 1 one core idles; split the out axis when
    # out_f is large enough to afford two tiles.

    # Pad parameters / activations. x is cast to the matmul dtype (bf16) -> half the HBM bytes.
    xp = jnp.pad(x, ((0, b_p - batch), (0, k_p - in_f))).astype(mm_dtype)
    wmu_p = jnp.pad(weight_mu, ((0, o_p - out_f), (0, k_p - in_f)))
    wrho_p = jnp.pad(weight_rho, ((0, o_p - out_f), (0, k_p - in_f)))

    # Gaussian noise from jax.random in the wrapper (portable: the on-chip PRNG has no
    # CPU/interpret lowering). Generated at the *unpadded* shape so samples are independent of
    # the tiling, then zero-padded (padded W entries become exactly mu = 0).
    if sample:
        assert key is not None, "key is required when sample=True"
        k_w, k_b = jax.random.split(key)
        eps_w = jax.random.normal(k_w, (out_f, in_f), jnp.float32)
        eps_b = jax.random.normal(k_b, (out_f,), jnp.float32)
        weps_p = jnp.pad(eps_w, ((0, o_p - out_f), (0, k_p - in_f)))

    # Bias sampling + bias log-probs hoisted to plain JAX (O(out_f) work); the kernel only adds
    # the sampled bias row.
    bsigma = _softplus(bias_rho)
    if sample:
        b_vec = bias_mu + bsigma * eps_b
        b_quad = 0.5 * (eps_b * eps_b)
    else:
        b_vec = bias_mu
        b_quad = jnp.zeros_like(bias_mu)
    bias_log_q = jnp.sum(-LOG_SQRT_2PI - jnp.log(bsigma) - b_quad)
    bias_log_p = jnp.sum(_mixture_logprob(b_vec))
    bias_p = jnp.pad(b_vec.reshape(1, out_f), ((0, 0), (0, o_p - out_f)))

    # Keep x resident across the whole K axis per batch tile when it fits the VMEM budget,
    # so it is DMA'd once per batch tile instead of once per out-feature tile.
    x_resident = (n_k * tb * tk * xp.dtype.itemsize) <= x_resident_bytes
    if x_resident:
        xk = xp.reshape(b_p, n_k, tk).transpose(1, 0, 2)          # (n_k, b_p, tk)
        x_spec = pl.BlockSpec((n_k, tb, tk), lambda b, i, k: (0, b, 0))
    else:
        xk = xp
        x_spec = pl.BlockSpec((tb, tk), lambda b, i, k: (b, k))

    w_spec = pl.BlockSpec((to, tk), lambda b, i, k: (i, k))
    in_specs = [x_spec, w_spec, w_spec]
    inputs = [xk, wmu_p, wrho_p]
    if sample:
        in_specs.append(w_spec)
        inputs.append(weps_p)
    in_specs.append(pl.BlockSpec((1, to), lambda b, i, k: (0, i)))
    inputs.append(bias_p)

    out_specs = (
        pl.BlockSpec((tb, to), lambda b, i, k: (b, i)),                        # y (acc over k)
        pl.BlockSpec((8, 128), lambda b, i, k, n_i=n_i: (b * n_i + i, 0)),     # log_p partials
        pl.BlockSpec((8, 128), lambda b, i, k, n_i=n_i: (b * n_i + i, 0)),     # log_q partials
    )
    out_shape = (
        jax.ShapeDtypeStruct((b_p, o_p), jnp.float32),
        jax.ShapeDtypeStruct((n_b * n_i * 8, 128), jnp.float32),
        jax.ShapeDtypeStruct((n_b * n_i * 8, 128), jnp.float32),
    )

    kernel = _make_kernel(sample=bool(sample), out_f=out_f, in_f=in_f, to=to, tk=tk,
                          n_k=n_k, x_resident=x_resident,
                          pad_rows=(o_p != out_f), pad_cols=(k_p != in_f),
                          mm_dtype=mm_dtype)

    # Advisory cost estimate: the kernel is transcendental-heavy (EUP-bound in sample mode).
    flops = 2 * b_p * o_p * k_p
    transcendentals = 6 * o_p * k_p
    bytes_accessed = (xk.size * xk.dtype.itemsize
                      + wmu_p.size * 4 + wrho_p.size * 4
                      + (weps_p.size * 4 if sample else 0)
                      + b_p * o_p * 4 + bias_p.size * 4
                      + 2 * n_b * n_i * 8 * 128 * 4)

    y_p, lp_part, lq_part = pl.pallas_call(
        kernel,
        out_shape=out_shape,
        grid=(n_b, n_i, n_k),
        in_specs=in_specs,
        out_specs=out_specs,
        compiler_params=pltpu.CompilerParams(
            dimension_semantics=("parallel", "parallel", "arbitrary")),
        cost_estimate=pl.CostEstimate(
            flops=flops, transcendentals=transcendentals, bytes_accessed=bytes_accessed),
    )(*inputs)

    y = y_p[:batch, :out_f]
    log_p = jnp.sum(lp_part) + bias_log_p     # final cross-lane reduce of VPU partial sums
    log_q = jnp.sum(lq_part) + bias_log_q
    return y, log_p, log_q


if __name__ == "__main__":
    # Small shapes consistent with the module: batch=8, in_features=32, out_features=16
    batch, in_features, out_features = 8, 32, 16

    root = jax.random.PRNGKey(0)
    k_x, k_wmu, k_wrho, k_bmu, k_brho, k_eps = jax.random.split(root, 6)

    x = jax.random.normal(k_x, (batch, in_features), jnp.float32)
    weight_mu = jax.random.uniform(k_wmu, (out_features, in_features), jnp.float32, -0.2, 0.2)
    weight_rho = jax.random.uniform(k_wrho, (out_features, in_features), jnp.float32, -5.0, -4.0)
    bias_mu = jax.random.uniform(k_bmu, (out_features,), jnp.float32, -0.2, 0.2)
    bias_rho = jax.random.uniform(k_brho, (out_features,), jnp.float32, -5.0, -4.0)

    # Pure-JAX reference helpers (mirror the PyTorch module's math).
    def gauss_logprob_sum(v, mu, sigma):
        return jnp.sum(-LOG_SQRT_2PI - jnp.log(sigma) - (v - mu) ** 2 / (2.0 * sigma ** 2))

    def mixture_logprob_sum(v):   # linear-space form, as in the PyTorch reference
        p1 = jnp.exp(-LOG_SQRT_2PI - math.log(SIGMA_1) - v ** 2 / (2.0 * SIGMA_1 ** 2))
        p2 = jnp.exp(-LOG_SQRT_2PI - math.log(SIGMA_2) - v ** 2 / (2.0 * SIGMA_2 ** 2))
        return jnp.sum(jnp.log(PI * p1 + (1.0 - PI) * p2))

    def bf16_linear(xx, ww, bb):
        return lax.dot_general(xx.astype(jnp.bfloat16), ww.astype(jnp.bfloat16),
                               (((1,), (1,)), ((), ())),
                               preferred_element_type=jnp.float32) + bb

    # ---- Training / sample path ----
    y, log_p, log_q = bayesian_linear_forward(
        x, weight_mu, weight_rho, bias_mu, bias_rho, key=k_eps, sample=True)
    jax.block_until_ready((y, log_p, log_q))
    assert y.shape == (batch, out_features)
    assert bool(jnp.all(jnp.isfinite(y)))
    assert bool(jnp.isfinite(log_p)) and bool(jnp.isfinite(log_q))

    # Reconstruct the exact same eps the wrapper drew, and check against a pure-JAX reference.
    k_w, k_b = jax.random.split(k_eps)
    eps_w = jax.random.normal(k_w, (out_features, in_features), jnp.float32)
    eps_b = jax.random.normal(k_b, (out_features,), jnp.float32)
    w_sig = _softplus(weight_rho)
    b_sig = _softplus(bias_rho)
    w_s = weight_mu + w_sig * eps_w
    b_s = bias_mu + b_sig * eps_b

    y_ref = bf16_linear(x, w_s, b_s)
    log_q_ref = gauss_logprob_sum(w_s, weight_mu, w_sig) + gauss_logprob_sum(b_s, bias_mu, b_sig)
    log_p_ref = mixture_logprob_sum(w_s) + mixture_logprob_sum(b_s)
    assert jnp.allclose(y, y_ref, atol=5e-3, rtol=5e-3)
    assert jnp.allclose(log_q, log_q_ref, rtol=2e-3, atol=0.5)
    assert jnp.allclose(log_p, log_p_ref, rtol=2e-3, atol=0.5)

    # ---- Eval path (weight = mu, bias = mu) ----
    y_e, log_p_e, log_q_e = bayesian_linear_forward(
        x, weight_mu, weight_rho, bias_mu, bias_rho, sample=False)
    jax.block_until_ready((y_e, log_p_e, log_q_e))

    y_e_ref = bf16_linear(x, weight_mu, bias_mu)
    log_q_e_ref = (gauss_logprob_sum(weight_mu, weight_mu, w_sig)
                   + gauss_logprob_sum(bias_mu, bias_mu, b_sig))
    log_p_e_ref = mixture_logprob_sum(weight_mu) + mixture_logprob_sum(bias_mu)
    assert jnp.allclose(y_e, y_e_ref, atol=5e-3, rtol=5e-3)
    assert jnp.allclose(log_q_e, log_q_e_ref, rtol=2e-3, atol=0.5)
    assert jnp.allclose(log_p_e, log_p_e_ref, rtol=2e-3, atol=0.5)

    print("KERNEL_OK")
</pallas_src>

<mosaic_0001>
module attributes {stable_mosaic.version = 11 : i64} {
  func.func @kernel(%arg0: i32, %arg1: i32, %arg2: i32, %arg3: memref<1x8x128xbf16, #tpu.memory_space<vmem>>, %arg4: memref<128x128xf32, #tpu.memory_space<vmem>>, %arg5: memref<128x128xf32, #tpu.memory_space<vmem>>, %arg6: memref<128x128xf32, #tpu.memory_space<vmem>>, %arg7: memref<1x128xf32, #tpu.memory_space<vmem>>, %arg8: memref<8x128xf32, #tpu.memory_space<vmem>>, %arg9: memref<8x128xf32, #tpu.memory_space<vmem>>, %arg10: memref<8x128xf32, #tpu.memory_space<vmem>>) attributes {dimension_semantics = [#tpu.dimension_semantics<parallel>, #tpu.dimension_semantics<parallel>, #tpu.dimension_semantics<arbitrary>], iteration_bounds = array<i64: 1, 1, 1>, scalar_prefetch = 0 : i64, scratch_operands = 0 : i64, tpu.core_type = #tpu.core_type<tc>, window_params = [{transform_indices = @transform_0, window_bounds = array<i64: 1, 8, 128>}, {transform_indices = @transform_1, window_bounds = array<i64: 128, 128>}, {transform_indices = @transform_2, window_bounds = array<i64: 128, 128>}, {transform_indices = @transform_3, window_bounds = array<i64: 128, 128>}, {transform_indices = @transform_4, window_bounds = array<i64: 1, 128>}, {transform_indices = @transform_5, window_bounds = array<i64: 8, 128>}, {transform_indices = @transform_6, window_bounds = array<i64: 8, 128>}, {transform_indices = @transform_7, window_bounds = array<i64: 8, 128>}]} {
    %c0_i32 = arith.constant 0 : i32
    %0 = arith.cmpi eq, %arg2, %c0_i32 : i32
    %1 = arith.extui %0 : i1 to i32
    %c0_i32_0 = arith.constant 0 : i32
    %2 = arith.cmpi ne, %1, %c0_i32_0 : i32
    scf.if %2 {
      %cst_18 = arith.constant 0.000000e+00 : f32
      %30 = vector.broadcast %cst_18 : f32 to vector<8x128xf32>
      %c0_19 = arith.constant 0 : index
      %c0_20 = arith.constant 0 : index
      %31 = vector.load %arg8[%c0_19, %c0_20] : memref<8x128xf32, #tpu.memory_space<vmem>>, vector<8x128xf32>
      tpu.vector_store %arg8[%c0_19, %c0_20], %30 {strides = array<i32>} : memref<8x128xf32, #tpu.memory_space<vmem>>, vector<8x128xf32>,
      %cst_21 = arith.constant 0.000000e+00 : f32
      %32 = vector.broadcast %cst_21 : f32 to vector<8x128xf32>
      %c0_22 = arith.constant 0 : index
      %c0_23 = arith.constant 0 : index
      %33 = vector.load %arg9[%c0_22, %c0_23] : memref<8x128xf32, #tpu.memory_space<vmem>>, vector<8x128xf32>
      tpu.vector_store %arg9[%c0_22, %c0_23], %32 {strides = array<i32>} : memref<8x128xf32, #tpu.memory_space<vmem>>, vector<8x128xf32>,
      %cst_24 = arith.constant 0.000000e+00 : f32
      %34 = vector.broadcast %cst_24 : f32 to vector<8x128xf32>
      %c0_25 = arith.constant 0 : index
      %c0_26 = arith.constant 0 : index
      %35 = vector.load %arg10[%c0_25, %c0_26] : memref<8x128xf32, #tpu.memory_space<vmem>>, vector<8x128xf32>
      tpu.vector_store %arg10[%c0_25, %c0_26], %34 {strides = array<i32>} : memref<8x128xf32, #tpu.memory_space<vmem>>, vector<8x128xf32>,
    } else {
    }
    %c0 = arith.constant 0 : index
    %c0_1 = arith.constant 0 : index
    %3 = vector.load %arg4[%c0, %c0_1] : memref<128x128xf32, #tpu.memory_space<vmem>>, vector<128x128xf32>
    %c0_2 = arith.constant 0 : index
    %c0_3 = arith.constant 0 : index
    %4 = vector.load %arg5[%c0_2, %c0_3] : memref<128x128xf32, #tpu.memory_space<vmem>>, vector<128x128xf32>
    %cst = arith.constant 0.000000e+00 : f32
    %5 = vector.broadcast %cst : f32 to vector<128x128xf32>
    %6 = arith.maximumf %4, %5 : vector<128x128xf32>
    %7 = math.absf %4 : vector<128x128xf32>
    %cst_4 = arith.constant 0.000000e+00 : f32
    %8 = vector.broadcast %cst_4 : f32 to vector<128x128xf32>
    %9 = arith.subf %8, %7 : vector<128x128xf32>
    %10 = math.exp %9 : vector<128x128xf32>
    %11 = math.log1p %10 : vector<128x128xf32>
    %12 = arith.addf %6, %11 : vector<128x128xf32>
    %c0_5 = arith.constant 0 : index
    %c0_6 = arith.constant 0 : index
    %13 = vector.load %arg6[%c0_5, %c0_6] : memref<128x128xf32, #tpu.memory_space<vmem>>, vector<128x128xf32>
    %14 = arith.mulf %12, %13 : vector<128x128xf32>
    %15 = arith.addf %3, %14 : vector<128x128xf32>
    %c0_i32_7 = arith.constant 0 : i32
    %16 = arith.cmpi eq, %arg0, %c0_i32_7 : i32
    %17 = arith.extui %16 : i1 to i32
    %c0_i32_8 = arith.constant 0 : i32
    %18 = arith.cmpi ne, %17, %c0_i32_8 : i32
    scf.if %18 {
      %30 = arith.mulf %13, %13 : vector<128x128xf32>
      %cst_18 = arith.constant 5.000000e-01 : f32
      %31 = vector.broadcast %cst_18 : f32 to vector<128x128xf32>
      %32 = arith.mulf %31, %30 : vector<128x128xf32>
      %33 = math.log %12 : vector<128x128xf32>
      %cst_19 = arith.constant -0.918938517 : f32
      %34 = vector.broadcast %cst_19 : f32 to vector<128x128xf32>
      %35 = arith.subf %34, %33 : vector<128x128xf32>
      %36 = arith.subf %35, %32 : vector<128x128xf32>
      %37 = arith.mulf %15, %15 : vector<128x128xf32>
      %cst_20 = arith.constant 5.000000e-01 : f32
      %38 = vector.broadcast %cst_20 : f32 to vector<128x128xf32>
      %39 = arith.mulf %37, %38 : vector<128x128xf32>
      %cst_21 = arith.constant -1.6120857 : f32
      %40 = vector.broadcast %cst_21 : f32 to vector<128x128xf32>
      %41 = arith.subf %40, %39 : vector<128x128xf32>
      %cst_22 = arith.constant -81376.8984 : f32
      %42 = vector.broadcast %cst_22 : f32 to vector<128x128xf32>
      %43 = arith.mulf %37, %42 : vector<128x128xf32>
      %cst_23 = arith.constant 6.000000e+00 : f32
      %44 = vector.broadcast %cst_23 : f32 to vector<128x128xf32>
      %45 = arith.addf %44, %43 : vector<128x128xf32>
      %46 = math.exp %45 : vector<128x128xf32>
      %cst_24 = arith.constant 1.000000e+00 : f32
      %47 = vector.broadcast %cst_24 : f32 to vector<128x128xf32>
      %48 = arith.mulf %47, %46 : vector<128x128xf32>
      %49 = math.log1p %48 : vector<128x128xf32>
      %50 = arith.addf %41, %49 : vector<128x128xf32>
      %c128_i32 = arith.constant 128 : i32
      %51 = arith.muli %arg1, %c128_i32 : i32
      %52 = tpu.iota {dimensions = array<i32: 0>} : vector<128x128xi32>
      %53 = vector.broadcast %51 : i32 to vector<128x128xi32>
      %54 = arith.addi %53, %52 : vector<128x128xi32>
      %c16_i32 = arith.constant 16 : i32
      %55 = vector.broadcast %c16_i32 : i32 to vector<128x128xi32>
      %56 = arith.cmpi slt, %54, %55 : vector<128x128xi32>
      %c128_i32_25 = arith.constant 128 : i32
      %57 = arith.muli %arg2, %c128_i32_25 : i32
      %58 = tpu.iota {dimensions = array<i32: 1>} : vector<128x128xi32>
      %59 = vector.broadcast %57 : i32 to vector<128x128xi32>
      %60 = arith.addi %59, %58 : vector<128x128xi32>
      %c32_i32 = arith.constant 32 : i32
      %61 = vector.broadcast %c32_i32 : i32 to vector<128x128xi32>
      %62 = arith.cmpi slt, %60, %61 : vector<128x128xi32>
      %63 = arith.andi %56, %62 : vector<128x128xi1>
      %cst_26 = arith.constant 0.000000e+00 : f32
      %64 = vector.broadcast %cst_26 : f32 to vector<128x128xf32>
      %65 = arith.select %63, %36, %64 : vector<128x128xi1>, vector<128x128xf32>
      %cst_27 = arith.constant 0.000000e+00 : f32
      %66 = vector.broadcast %cst_27 : f32 to vector<128x128xf32>
      %67 = arith.select %63, %50, %66 : vector<128x128xi1>, vector<128x128xf32>
      %c0_28 = arith.constant 0 : index
      %c0_29 = arith.constant 0 : index
      %68 = vector.load %arg9[%c0_28, %c0_29] : memref<8x128xf32, #tpu.memory_space<vmem>>, vector<8x128xf32>
      %69 = vector.extract_strided_slice %67 {offsets = [0, 0], sizes = [8, 128], strides = [1, 1]} : vector<128x128xf32> to vector<8x128xf32>
      %70 = vector.extract_strided_slice %67 {offsets = [8, 0], sizes = [8, 128], strides = [1, 1]} : vector<128x128xf32> to vector<8x128xf32>
      %71 = vector.extract_strided_slice %67 {offsets = [16, 0], sizes = [8, 128], strides = [1, 1]} : vector<128x128xf32> to vector<8x128xf32>
      %72 = vector.extract_strided_slice %67 {offsets = [24, 0], sizes = [8, 128], strides = [1, 1]} : vector<128x128xf32> to vector<8x128xf32>
      %73 = vector.extract_strided_slice %67 {offsets = [32, 0], sizes = [8, 128], strides = [1, 1]} : vector<128x128xf32> to vector<8x128xf32>
      %74 = vector.extract_strided_slice %67 {offsets = [40, 0], sizes = [8, 128], strides = [1, 1]} : vector<128x128xf32> to vector<8x128xf32>
      %75 = vector.extract_strided_slice %67 {offsets = [48, 0], sizes = [8, 128], strides = [1, 1]} : vector<128x128xf32> to vector<8x128xf32>
      %76 = vector.extract_strided_slice %67 {offsets = [56, 0], sizes = [8, 128], strides = [1, 1]} : vector<128x128xf32> to vector<8x128xf32>
      %77 = vector.extract_strided_slice %67 {offsets = [64, 0], sizes = [8, 128], strides = [1, 1]} : vector<128x128xf32> to vector<8x128xf32>
      %78 = vector.extract_strided_slice %67 {offsets = [72, 0], sizes = [8, 128], strides = [1, 1]} : vector<128x128xf32> to vector<8x128xf32>
      %79 = vector.extract_strided_slice %67 {offsets = [80, 0], sizes = [8, 128], strides = [1, 1]} : vector<128x128xf32> to vector<8x128xf32>
      %80 = vector.extract_strided_slice %67 {offsets = [88, 0], sizes = [8, 128], strides = [1, 1]} : vector<128x128xf32> to vector<8x128xf32>
      %81 = vector.extract_strided_slice %67 {offsets = [96, 0], sizes = [8, 128], strides = [1, 1]} : vector<128x128xf32> to vector<8x128xf32>
      %82 = vector.extract_strided_slice %67 {offsets = [104, 0], sizes = [8, 128], strides = [1, 1]} : vector<128x128xf32> to vector<8x128xf32>
      %83 = vector.extract_strided_slice %67 {offsets = [112, 0], sizes = [8, 128], strides = [1, 1]} : vector<128x128xf32> to vector<8x128xf32>
      %84 = vector.extract_strided_slice %67 {offsets = [120, 0], sizes = [8, 128], strides = [1, 1]} : vector<128x128xf32> to vector<8x128xf32>
      %85 = arith.addf %69, %70 : vector<8x128xf32>
      %86 = arith.addf %71, %72 : vector<8x128xf32>
      %87 = arith.addf %73, %74 : vector<8x128xf32>
      %88 = arith.addf %75, %76 : vector<8x128xf32>
      %89 = arith.addf %77, %78 : vector<8x128xf32>
      %90 = arith.addf %79, %80 : vector<8x128xf32>
      %91 = arith.addf %81, %82 : vector<8x128xf32>
      %92 = arith.addf %83, %84 : vector<8x128xf32>
      %93 = arith.addf %85, %86 : vector<8x128xf32>
      %94 = arith.addf %87, %88 : vector<8x128xf32>
      %95 = arith.addf %89, %90 : vector<8x128xf32>
      %96 = arith.addf %91, %92 : vector<8x128xf32>
      %97 = arith.addf %93, %94 : vector<8x128xf32>
      %98 = arith.addf %95, %96 : vector<8x128xf32>
      %99 = arith.addf %97, %98 : vector<8x128xf32>
      %100 = arith.addf %68, %99 : vector<8x128xf32>
      %c0_30 = arith.constant 0 : index
      %c0_31 = arith.constant 0 : index
      %101 = vector.load %arg9[%c0_30, %c0_31] : memref<8x128xf32, #tpu.memory_space<vmem>>, vector<8x128xf32>
      tpu.vector_store %arg9[%c0_30, %c0_31], %100 {strides = array<i32>} : memref<8x128xf32, #tpu.memory_space<vmem>>, vector<8x128xf32>,
      %c0_32 = arith.constant 0 : index
      %c0_33 = arith.constant 0 : index
      %102 = vector.load %arg10[%c0_32, %c0_33] : memref<8x128xf32, #tpu.memory_space<vmem>>, vector<8x128xf32>
      %103 = vector.extract_strided_slice %65 {offsets = [0, 0], sizes = [8, 128], strides = [1, 1]} : vector<128x128xf32> to vector<8x128xf32>
      %104 = vector.extract_strided_slice %65 {offsets = [8, 0], sizes = [8, 128], strides = [1, 1]} : vector<128x128xf32> to vector<8x128xf32>
      %105 = vector.extract_strided_slice %65 {offsets = [16, 0], sizes = [8, 128], strides = [1, 1]} : vector<128x128xf32> to vector<8x128xf32>
      %106 = vector.extract_strided_slice %65 {offsets = [24, 0], sizes = [8, 128], strides = [1, 1]} : vector<128x128xf32> to vector<8x128xf32>
      %107 = vector.extract_strided_slice %65 {offsets = [32, 0], sizes = [8, 128], strides = [1, 1]} : vector<128x128xf32> to vector<8x128xf32>
      %108 = vector.extract_strided_slice %65 {offsets = [40, 0], sizes = [8, 128], strides = [1, 1]} : vector<128x128xf32> to vector<8x128xf32>
      %109 = vector.extract_strided_slice %65 {offsets = [48, 0], sizes = [8, 128], strides = [1, 1]} : vector<128x128xf32> to vector<8x128xf32>
      %110 = vector.extract_strided_slice %65 {offsets = [56, 0], sizes = [8, 128], strides = [1, 1]} : vector<128x128xf32> to vector<8x128xf32>
      %111 = vector.extract_strided_slice %65 {offsets = [64, 0], sizes = [8, 128], strides = [1, 1]} : vector<128x128xf32> to vector<8x128xf32>
      %112 = vector.extract_strided_slice %65 {offsets = [72, 0], sizes = [8, 128], strides = [1, 1]} : vector<128x128xf32> to vector<8x128xf32>
      %113 = vector.extract_strided_slice %65 {offsets = [80, 0], sizes = [8, 128], strides = [1, 1]} : vector<128x128xf32> to vector<8x128xf32>
      %114 = vector.extract_strided_slice %65 {offsets = [88, 0], sizes = [8, 128], strides = [1, 1]} : vector<128x128xf32> to vector<8x128xf32>
      %115 = vector.extract_strided_slice %65 {offsets = [96, 0], sizes = [8, 128], strides = [1, 1]} : vector<128x128xf32> to vector<8x128xf32>
      %116 = vector.extract_strided_slice %65 {offsets = [104, 0], sizes = [8, 128], strides = [1, 1]} : vector<128x128xf32> to vector<8x128xf32>
      %117 = vector.extract_strided_slice %65 {offsets = [112, 0], sizes = [8, 128], strides = [1, 1]} : vector<128x128xf32> to vector<8x128xf32>
      %118 = vector.extract_strided_slice %65 {offsets = [120, 0], sizes = [8, 128], strides = [1, 1]} : vector<128x128xf32> to vector<8x128xf32>
      %119 = arith.addf %103, %104 : vector<8x128xf32>
      %120 = arith.addf %105, %106 : vector<8x128xf32>
      %121 = arith.addf %107, %108 : vector<8x128xf32>
      %122 = arith.addf %109, %110 : vector<8x128xf32>
      %123 = arith.addf %111, %112 : vector<8x128xf32>
      %124 = arith.addf %113, %114 : vector<8x128xf32>
      %125 = arith.addf %115, %116 : vector<8x128xf32>
      %126 = arith.addf %117, %118 : vector<8x128xf32>
      %127 = arith.addf %119, %120 : vector<8x128xf32>
      %128 = arith.addf %121, %122 : vector<8x128xf32>
      %129 = arith.addf %123, %124 : vector<8x128xf32>
      %130 = arith.addf %125, %126 : vector<8x128xf32>
      %131 = arith.addf %127, %128 : vector<8x128xf32>
      %132 = arith.addf %129, %130 : vector<8x128xf32>
      %133 = arith.addf %131, %132 : vector<8x128xf32>
      %134 = arith.addf %102, %133 : vector<8x128xf32>
      %c0_34 = arith.constant 0 : index
      %c0_35 = arith.constant 0 : index
      %135 = vector.load %arg10[%c0_34, %c0_35] : memref<8x128xf32, #tpu.memory_space<vmem>>, vector<8x128xf32>
      tpu.vector_store %arg10[%c0_34, %c0_35], %134 {strides = array<i32>} : memref<8x128xf32, #tpu.memory_space<vmem>>, vector<8x128xf32>,
    } else {
    }
    %19 = arith.index_cast %arg2 : i32 to index
    %c0_9 = arith.constant 0 : index
    %c0_10 = arith.constant 0 : index
    %20 = vector.load %arg3[%19, %c0_9, %c0_10] : memref<1x8x128xbf16, #tpu.memory_space<vmem>>, vector<1x8x128xbf16>
    %21 = vector.shape_cast %20 : vector<1x8x128xbf16> to vector<8x128xbf16>
    %c0_11 = arith.constant 0 : index
    %c0_12 = arith.constant 0 : index
    %22 = vector.load %arg8[%c0_11, %c0_12] : memref<8x128xf32, #tpu.memory_space<vmem>>, vector<8x128xf32>
    %23 = arith.truncf %15 : vector<128x128xf32> to vector<128x128xbf16>
    %cst_13 = arith.constant dense<0.000000e+00> : vector<8x128xf32>
    %24 = tpu.matmul %21, %23, %cst_13 {dimension_numbers = #tpu.dot_dimension_numbers<[1], [1], [0], [0], [0, 0, 1, 0], [], []>} : vector<8x128xbf16>, vector<128x128xbf16>, vector<8x128xf32> -> vector<8x128xf32>
    %25 = arith.addf %22, %24 : vector<8x128xf32>
    %c0_14 = arith.constant 0 : index
    %c0_15 = arith.constant 0 : index
    %26 = vector.load %arg8[%c0_14, %c0_15] : memref<8x128xf32, #tpu.memory_space<vmem>>, vector<8x128xf32>
    tpu.vector_store %arg8[%c0_14, %c0_15], %25 {strides = array<i32>} : memref<8x128xf32, #tpu.memory_space<vmem>>, vector<8x128xf32>,
    %c0_i32_16 = arith.constant 0 : i32
    %27 = arith.cmpi eq, %arg2, %c0_i32_16 : i32
    %28 = arith.extui %27 : i1 to i32
    %c0_i32_17 = arith.constant 0 : i32
    %29 = arith.cmpi ne, %28, %c0_i32_17 : i32
    scf.if %29 {
      %c0_18 = arith.constant 0 : index
      %c0_19 = arith.constant 0 : index
      %30 = vector.load %arg8[%c0_18, %c0_19] : memref<8x128xf32, #tpu.memory_space<vmem>>, vector<8x128xf32>
      %c0_20 = arith.constant 0 : index
      %c0_21 = arith.constant 0 : index
      %31 = vector.load %arg7[%c0_20, %c0_21] : memref<1x128xf32, #tpu.memory_space<vmem>>, vector<1x128xf32>
      %32 = vector.broadcast %31 : vector<1x128xf32> to vector<8x128xf32>
      %33 = arith.addf %30, %32 : vector<8x128xf32>
      %c0_22 = arith.constant 0 : index
      %c0_23 = arith.constant 0 : index
      %34 = vector.load %arg8[%c0_22, %c0_23] : memref<8x128xf32, #tpu.memory_space<vmem>>, vector<8x128xf32>
      tpu.vector_store %arg8[%c0_22, %c0_23], %33 {strides = array<i32>} : memref<8x128xf32, #tpu.memory_space<vmem>>, vector<8x128xf32>,
    } else {
    }
    return
  }
  func.func @transform_0(%arg0: i32, %arg1: i32, %arg2: i32) -> (i32, i32, i32) {
    %c0_i32 = arith.constant 0 : i32
    %c0_i32_0 = arith.constant 0 : i32
    %c0_i32_1 = arith.constant 0 : i32
    return %c0_i32, %arg0, %c0_i32_0 : i32, i32, i32
  }
  func.func @transform_1(%arg0: i32, %arg1: i32, %arg2: i32) -> (i32, i32) {
    %c0_i32 = arith.constant 0 : i32
    return %arg1, %arg2 : i32, i32
  }
  func.func @transform_2(%arg0: i32, %arg1: i32, %arg2: i32) -> (i32, i32) {
    %c0_i32 = arith.constant 0 : i32
    return %arg1, %arg2 : i32, i32
  }
  func.func @transform_3(%arg0: i32, %arg1: i32, %arg2: i32) -> (i32, i32) {
    %c0_i32 = arith.constant 0 : i32
    return %arg1, %arg2 : i32, i32
  }
  func.func @transform_4(%arg0: i32, %arg1: i32, %arg2: i32) -> (i32, i32) {
    %c0_i32 = arith.constant 0 : i32
    %c0_i32_0 = arith.constant 0 : i32
    return %c0_i32, %arg1 : i32, i32
  }
  func.func @transform_5(%arg0: i32, %arg1: i32, %arg2: i32) -> (i32, i32) {
    %c0_i32 = arith.constant 0 : i32
    return %arg0, %arg1 : i32, i32
  }
  func.func @transform_6(%arg0: i32, %arg1: i32, %arg2: i32) -> (i32, i32) {
    %c1_i32 = arith.constant 1 : i32
    %0 = arith.muli %arg0, %c1_i32 : i32
    %1 = arith.addi %0, %arg1 : i32
    %c0_i32 = arith.constant 0 : i32
    %c0_i32_0 = arith.constant 0 : i32
    return %1, %c0_i32 : i32, i32
  }
  func.func @transform_7(%arg0: i32, %arg1: i32, %arg2: i32) -> (i32, i32) {
    %c1_i32 = arith.constant 1 : i32
    %0 = arith.muli %arg0, %c1_i32 : i32
    %1 = arith.addi %0, %arg1 : i32
    %c0_i32 = arith.constant 0 : i32
    %c0_i32_0 = arith.constant 0 : i32
    return %1, %c0_i32 : i32, i32
  }
}

</mosaic_0001>

<llo_original>
// kernel: tpu_custom_call.1
$region0: #{tpu_custom_call.1}
  #allocation0 [shape = 'u32[]', space=smem, size = 0x4, offset = 0x4, fixed_abs, tag = 'smem constant byte address 0x4 - core index']
  #allocation1 [shape = 'u32[72,128]{1,0:T(1,128)}', space=vmem, size = 0x9000, scoped, tag = 'internal scratch']
  %s0 = inlined_call_operand.hbm [shape: bf16[1,8,128], index: 0, kind: input, shape index: {}]
  %s1 = inlined_call_operand.hbm [shape: f32[128,128], index: 1, kind: input, shape index: {}]
  %s2 = inlined_call_operand.hbm [shape: f32[128,128], index: 2, kind: input, shape index: {}]
  %s3 = inlined_call_operand.hbm [shape: f32[128,128], index: 3, kind: input, shape index: {}]
  %s4 = inlined_call_operand.vmem [shape: f32[1,128], index: 4, kind: input, shape index: {}]
  %s5 = inlined_call_operand.hbm [shape: f32[8,128], index: 5, kind: output, shape index: {0}]
  %s6 = inlined_call_operand.hbm [shape: f32[8,128], index: 6, kind: output, shape index: {1}]
  %s7 = inlined_call_operand.hbm [shape: f32[8,128], index: 7, kind: output, shape index: {2}]
  %8 = xla_tuple %s5, %s6, %s7
  %s9 = sld [smem:[#allocation0]]
  $region74: #{tpu_custom_call.1} parent=0
    _
  %s11 = ssub.s32 1, %s9
  %s12 = scalar_select 0, %s11, %s9
  $region1: #{tpu_custom_call.1} parent=0
    #allocation2 [shape = 'u8[2048]{0}', space=vmem, size = 0x800, scoped, tag = 'input window, operand 0, single buffered']
    #allocation3 [shape = 's32[1]{0}', space=sflag, size = 0x4, scoped, tag = 'scoped memory for tpu_custom_call.1']
    #allocation4 [shape = 's32[1]{0}', space=sflag, size = 0x4, scoped, tag = 'scoped memory for tpu_custom_call.1']
    #allocation5 [shape = 'u8[65536]{0}', space=vmem, size = 0x10000, scoped, tag = 'input window, operand 1, single buffered']
    #allocation6 [shape = 's32[1]{0}', space=sflag, size = 0x4, scoped, tag = 'scoped memory for tpu_custom_call.1']
    #allocation7 [shape = 'u8[65536]{0}', space=vmem, size = 0x10000, scoped, tag = 'input window, operand 2, single buffered']
    #allocation8 [shape = 'u8[65536]{0}', space=vmem, size = 0x10000, scoped, tag = 'input window, operand 3, single buffered']
    #allocation9 [shape = 's32[1]{0}', space=sflag, size = 0x4, scoped, tag = 'scoped memory for tpu_custom_call.1']
    #allocation10 [shape = 'u8[4096]{0}', space=vmem, size = 0x1000, scoped, tag = 'output window, operand 0, single buffered']
    #allocation11 [shape = 'u8[4096]{0}', space=vmem, size = 0x1000, scoped, tag = 'output window, operand 1, single buffered']
    #allocation12 [shape = 's32[1]{0}', space=sflag, size = 0x4, scoped, tag = 'scoped memory for tpu_custom_call.1']
    #allocation13 [shape = 'u8[4096]{0}', space=vmem, size = 0x1000, scoped, tag = 'output window, operand 2, single buffered']
    %13 = vsyncpa [#allocation3], 0
    %14 = vsyncpa [#allocation6], 0
    %15 = vsyncpa [#allocation9], 0
    %16 = vsyncpa [#allocation4], 0
    %17 = vsyncpa [#allocation12], 0
    // Predicated region
    $region2: #{tpu_custom_call.1} parent=1 // pred_check
      _
    $region3: #{tpu_custom_call.1} parent=1 // pred_check_branch
      %19 = sbr.rel (0) target = $region5
    $region4: #{tpu_custom_call.1} parent=1 // pred_region
      %21 = vsyncadd [#allocation3], 0
      %s23 = sshll.u32 %s0, 4
      %s24 = int_to_ptr.hbm [resolvable:$true] %s23
      %s25 = sshll.u32 [#allocation2], 4
      %s26 = int_to_ptr.vmem [resolvable:$true] %s25
      %28 = dma.hbm_to_vmem [thread:$0]  %s24, 64, %s26, [#allocation3]
    $region5: #{tpu_custom_call.1} parent=1 // pred_fallthru
      _
    // Predicated region
    $region6: #{tpu_custom_call.1} parent=1 // pred_check
      _
    $region7: #{tpu_custom_call.1} parent=1 // pred_check_branch
      %30 = sbr.rel (0) target = $region9
    $region8: #{tpu_custom_call.1} parent=1 // pred_region
      %32 = vsyncadd [#allocation6], 0
      %s33 = sshll.u32 %s1, 4
      %s34 = int_to_ptr.hbm [resolvable:$true] %s33
      %s35 = sshll.u32 [#allocation5], 4
      %s36 = int_to_ptr.vmem [resolvable:$true] %s35
      %41 = dma.hbm_to_vmem [thread:$0]  %s34, 2048, %s36, [#allocation6], 128, 128, 8
    $region9: #{tpu_custom_call.1} parent=1 // pred_fallthru
      _
    // Predicated region
    $region10: #{tpu_custom_call.1} parent=1 // pred_check
      _
    $region11: #{tpu_custom_call.1} parent=1 // pred_check_branch
      %43 = sbr.rel (0) target = $region13
    $region12: #{tpu_custom_call.1} parent=1 // pred_region
      %45 = vsyncadd [#allocation6], 0
      %s46 = sshll.u32 %s2, 4
      %s47 = int_to_ptr.hbm [resolvable:$true] %s46
      %s48 = sshll.u32 [#allocation7], 4
      %s49 = int_to_ptr.vmem [resolvable:$true] %s48
      %54 = dma.hbm_to_vmem [thread:$0]  %s47, 2048, %s49, [#allocation6], 128, 128, 8
    $region13: #{tpu_custom_call.1} parent=1 // pred_fallthru
      _
    // Predicated region
    $region14: #{tpu_custom_call.1} parent=1 // pred_check
      _
    $region15: #{tpu_custom_call.1} parent=1 // pred_check_branch
      %56 = sbr.rel (0) target = $region17
    $region16: #{tpu_custom_call.1} parent=1 // pred_region
      %58 = vsyncadd [#allocation9], 0
      %s59 = sshll.u32 %s3, 4
      %s60 = int_to_ptr.hbm [resolvable:$true] %s59
      %s61 = sshll.u32 [#allocation8], 4
      %s62 = int_to_ptr.vmem [resolvable:$true] %s61
      %67 = dma.hbm_to_vmem [thread:$0]  %s60, 2048, %s62, [#allocation9], 128, 128, 8
    $region17: #{tpu_custom_call.1} parent=1 // pred_fallthru
      _
    // Predicated region
    $region18: #{tpu_custom_call.1} parent=1 // pred_check
      _
    $region19: #{tpu_custom_call.1} parent=1 // pred_check_branch
      %69 = sbr.rel (0) target = $region21
    $region20: #{tpu_custom_call.1} parent=1 // pred_region
      _
    $region21: #{tpu_custom_call.1} parent=1 // pred_fallthru
      _
    // Predicated region
    $region22: #{tpu_custom_call.1} parent=1 // pred_check
      _
    $region23: #{tpu_custom_call.1} parent=1 // pred_check_branch
      %71 = sbr.rel (0) target = $region25
    $region24: #{tpu_custom_call.1} parent=1 // pred_region
      %73 = dma.done [#allocation3], 64
    $region25: #{tpu_custom_call.1} parent=1 // pred_fallthru
      _
    // Predicated region
    $region26: #{tpu_custom_call.1} parent=1 // pred_check
      _
    $region27: #{tpu_custom_call.1} parent=1 // pred_check_branch
      %75 = sbr.rel (0) target = $region29
    $region28: #{tpu_custom_call.1} parent=1 // pred_region
      %77 = dma.done [#allocation6], 2048
    $region29: #{tpu_custom_call.1} parent=1 // pred_fallthru
      _
    // Predicated region
    $region30: #{tpu_custom_call.1} parent=1 // pred_check
      _
    $region31: #{tpu_custom_call.1} parent=1 // pred_check_branch
      %79 = sbr.rel (0) target = $region33
    $region32: #{tpu_custom_call.1} parent=1 // pred_region
      %81 = dma.done [#allocation6], 2048
    $region33: #{tpu_custom_call.1} parent=1 // pred_fallthru
      _
    // Predicated region
    $region34: #{tpu_custom_call.1} parent=1 // pred_check
      _
    $region35: #{tpu_custom_call.1} parent=1 // pred_check_branch
      %83 = sbr.rel (0) target = $region37
    $region36: #{tpu_custom_call.1} parent=1 // pred_region
      %85 = dma.done [#allocation9], 2048
    $region37: #{tpu_custom_call.1} parent=1 // pred_fallthru
      _
    %s86 = sadd.s32 0, 0
    %s87 = sadd.s32 0, 0
    %p88 = scmp.eq.s32.totalorder 0, 0
    // Predicated region
    $region38: #{tpu_custom_call.1} parent=1 // pred_check
      %p89 = pneg %p88
    $region39: #{tpu_custom_call.1} parent=1 // pred_check_branch
      %91 = sbr.rel (%p89) target = $region41
    $region40: #{tpu_custom_call.1} parent=1 // pred_region
      %92 = vst [vmem:[#allocation10] sm:$0xff] 0.0
      %93 = vst [vmem:[#allocation11] sm:$0xff] 0.0
      %94 = vst [vmem:[#allocation13] sm:$0xff] 0.0
    $region41: #{tpu_custom_call.1} parent=1 // pred_fallthru
      _
    %v95 = vld [vmem:[#allocation5] sm:$0xff]
    %v96 = vld [vmem:[#allocation5 + $0x8] sm:$0xff]
    %v97 = vld [vmem:[#allocation5 + $0x10] sm:$0xff]
    %v98 = vld [vmem:[#allocation5 + $0x18] sm:$0xff]
    %v99 = vld [vmem:[#allocation5 + $0x20] sm:$0xff]
    %v100 = vld [vmem:[#allocation5 + $0x28] sm:$0xff]
    %v101 = vld [vmem:[#allocation5 + $0x30] sm:$0xff]
    %v102 = vld [vmem:[#allocation5 + $0x38] sm:$0xff]
    %v103 = vld [vmem:[#allocation5 + $0x40] sm:$0xff]
    %v104 = vld [vmem:[#allocation5 + $0x48] sm:$0xff]
    %v105 = vld [vmem:[#allocation5 + $0x50] sm:$0xff]
    %v106 = vld [vmem:[#allocation5 + $0x58] sm:$0xff]
    %v107 = vld [vmem:[#allocation5 + $0x60] sm:$0xff]
    %v108 = vld [vmem:[#allocation5 + $0x68] sm:$0xff]
    %v109 = vld [vmem:[#allocation5 + $0x70] sm:$0xff]
    %v110 = vld [vmem:[#allocation5 + $0x78] sm:$0xff]
    %v111 = vld [vmem:[#allocation7] sm:$0xff]
    %v112 = vld [vmem:[#allocation7 + $0x8] sm:$0xff]
    %v113 = vld [vmem:[#allocation7 + $0x10] sm:$0xff]
    %v114 = vld [vmem:[#allocation7 + $0x18] sm:$0xff]
    %v115 = vld [vmem:[#allocation7 + $0x20] sm:$0xff]
    %v116 = vld [vmem:[#allocation7 + $0x28] sm:$0xff]
    %v117 = vld [vmem:[#allocation7 + $0x30] sm:$0xff]
    %v118 = vld [vmem:[#allocation7 + $0x38] sm:$0xff]
    %v119 = vld [vmem:[#allocation7 + $0x40] sm:$0xff]
    %v120 = vld [vmem:[#allocation7 + $0x48] sm:$0xff]
    %v121 = vld [vmem:[#allocation7 + $0x50] sm:$0xff]
    %v122 = vld [vmem:[#allocation7 + $0x58] sm:$0xff]
    %v123 = vld [vmem:[#allocation7 + $0x60] sm:$0xff]
    %v124 = vld [vmem:[#allocation7 + $0x68] sm:$0xff]
    %v125 = vld [vmem:[#allocation7 + $0x70] sm:$0xff]
    %v126 = vld [vmem:[#allocation7 + $0x78] sm:$0xff]
    %v127 = vmax.f32 %v111, 0.0
    %v128 = vmax.f32 %v112, 0.0
    %v129 = vmax.f32 %v113, 0.0
    %v130 = vmax.f32 %v114, 0.0
    %v131 = vmax.f32 %v115, 0.0
    %v132 = vmax.f32 %v116, 0.0
    %v133 = vmax.f32 %v117, 0.0
    %v134 = vmax.f32 %v118, 0.0
    %v135 = vmax.f32 %v119, 0.0
    %v136 = vmax.f32 %v120, 0.0
    %v137 = vmax.f32 %v121, 0.0
    %v138 = vmax.f32 %v122, 0.0
    %v139 = vmax.f32 %v123, 0.0
    %v140 = vmax.f32 %v124, 0.0
    %v141 = vmax.f32 %v125, 0.0
    %v142 = vmax.f32 %v126, 0.0
    %v143 = vand.u32 2147483647, %v111
    %v144 = vand.u32 2147483647, %v112
    %v145 = vand.u32 2147483647, %v113
    %v146 = vand.u32 2147483647, %v114
    %v147 = vand.u32 2147483647, %v115
    %v148 = vand.u32 2147483647, %v116
    %v149 = vand.u32 2147483647, %v117
    %v150 = vand.u32 2147483647, %v118
    %v151 = vand.u32 2147483647, %v119
    %v152 = vand.u32 2147483647, %v120
    %v153 = vand.u32 2147483647, %v121
    %v154 = vand.u32 2147483647, %v122
    %v155 = vand.u32 2147483647, %v123
    %v156 = vand.u32 2147483647, %v124
    %v157 = vand.u32 2147483647, %v125
    %v158 = vand.u32 2147483647, %v126
    %v159 = vsub.f32 0.0, %v143
    %v160 = vsub.f32 0.0, %v144
    %v161 = vsub.f32 0.0, %v145
    %v162 = vsub.f32 0.0, %v146
    %v163 = vsub.f32 0.0, %v147
    %v164 = vsub.f32 0.0, %v148
    %v165 = vsub.f32 0.0, %v149
    %v166 = vsub.f32 0.0, %v150
    %v167 = vsub.f32 0.0, %v151
    %v168 = vsub.f32 0.0, %v152
    %v169 = vsub.f32 0.0, %v153
    %v170 = vsub.f32 0.0, %v154
    %v171 = vsub.f32 0.0, %v155
    %v172 = vsub.f32 0.0, %v156
    %v173 = vsub.f32 0.0, %v157
    %v174 = vsub.f32 0.0, %v158
    %v175 = vmul.f32 %v159, 1.442695
    %v176 = vpow.pop %v175
    %v177 = vmul.f32 %v160, 1.442695
    %v178 = vpow.pop %v177
    %v179 = vmul.f32 %v161, 1.442695
    %v180 = vpow.pop %v179
    %v181 = vmul.f32 %v162, 1.442695
    %v182 = vpow.pop %v181
    %v183 = vmul.f32 %v163, 1.442695
    %v184 = vpow.pop %v183
    %v185 = vmul.f32 %v164, 1.442695
    %v186 = vpow.pop %v185
    %v187 = vmul.f32 %v165, 1.442695
    %v188 = vpow.pop %v187
    %v189 = vmul.f32 %v166, 1.442695
    %v190 = vpow.pop %v189
    %v191 = vmul.f32 %v167, 1.442695
    %v192 = vpow.pop %v191
    %v193 = vmul.f32 %v168, 1.442695
    %v194 = vpow.pop %v193
    %v195 = vmul.f32 %v169, 1.442695
    %v196 = vpow.pop %v195
    %v197 = vmul.f32 %v170, 1.442695
    %v198 = vpow.pop %v197
    %v199 = vmul.f32 %v171, 1.442695
    %v200 = vpow.pop %v199
    %v201 = vmul.f32 %v172, 1.442695
    %v202 = vpow.pop %v201
    %v203 = vmul.f32 %v173, 1.442695
    %v204 = vpow.pop %v203
    %v205 = vmul.f32 %v174, 1.442695
    %v206 = vpow.pop %v205
    %v207 = vadd.f32 %v176, 1.0
    %v208 = vlog2.pop %v207
    %v209 = vmul.f32 %v208, 0.6931472
    %v210 = vmul.f32 -0.5, %v176
    %v211 = vadd.f32 %v210, 1.0
    %v212 = vmul.f32 %v211, %v176
    %v213 = vand.u32 2147483647, %v176
    %vm214 = vcmp.lt.f32.partialorder %v213, 0.0004427343
    %v215 = vsel %vm214, %v212, %v209
    %v216 = vadd.f32 %v178, 1.0
    %v217 = vlog2.pop %v216
    %v218 = vmul.f32 %v217, 0.6931472
    %v219 = vmul.f32 -0.5, %v178
    %v220 = vadd.f32 %v219, 1.0
    %v221 = vmul.f32 %v220, %v178
    %v222 = vand.u32 2147483647, %v178
    %vm223 = vcmp.lt.f32.partialorder %v222, 0.0004427343
    %v224 = vsel %vm223, %v221, %v218
    %v225 = vadd.f32 %v180, 1.0
    %v226 = vlog2.pop %v225
    %v227 = vmul.f32 %v226, 0.6931472
    %v228 = vmul.f32 -0.5, %v180
    %v229 = vadd.f32 %v228, 1.0
    %v230 = vmul.f32 %v229, %v180
    %v231 = vand.u32 2147483647, %v180
    %vm232 = vcmp.lt.f32.partialorder %v231, 0.0004427343
    %v233 = vsel %vm232, %v230, %v227
    %v234 = vadd.f32 %v182, 1.0
    %v235 = vlog2.pop %v234
    %v236 = vmul.f32 %v235, 0.6931472
    %v237 = vmul.f32 -0.5, %v182
    %v238 = vadd.f32 %v237, 1.0
    %v239 = vmul.f32 %v238, %v182
    %v240 = vand.u32 2147483647, %v182
    %vm241 = vcmp.lt.f32.partialorder %v240, 0.0004427343
    %v242 = vsel %vm241, %v239, %v236
    %v243 = vadd.f32 %v184, 1.0
    %v244 = vlog2.pop %v243
    %v245 = vmul.f32 %v244, 0.6931472
    %v246 = vmul.f32 -0.5, %v184
    %v247 = vadd.f32 %v246, 1.0
    %v248 = vmul.f32 %v247, %v184
    %v249 = vand.u32 2147483647, %v184
    %vm250 = vcmp.lt.f32.partialorder %v249, 0.0004427343
    %v251 = vsel %vm250, %v248, %v245
    %v252 = vadd.f32 %v186, 1.0
    %v253 = vlog2.pop %v252
    %v254 = vmul.f32 %v253, 0.6931472
    %v255 = vmul.f32 -0.5, %v186
    %v256 = vadd.f32 %v255, 1.0
    %v257 = vmul.f32 %v256, %v186
    %v258 = vand.u32 2147483647, %v186
    %vm259 = vcmp.lt.f32.partialorder %v258, 0.0004427343
    %v260 = vsel %vm259, %v257, %v254
    %v261 = vadd.f32 %v188, 1.0
    %v262 = vlog2.pop %v261
    %v263 = vmul.f32 %v262, 0.6931472
    %v264 = vmul.f32 -0.5, %v188
    %v265 = vadd.f32 %v264, 1.0
    %v266 = vmul.f32 %v265, %v188
    %v267 = vand.u32 2147483647, %v188
    %vm268 = vcmp.lt.f32.partialorder %v267, 0.0004427343
    %v269 = vsel %vm268, %v266, %v263
    %v270 = vadd.f32 %v190, 1.0
    %v271 = vlog2.pop %v270
    %v272 = vmul.f32 %v271, 0.6931472
    %v273 = vmul.f32 -0.5, %v190
    %v274 = vadd.f32 %v273, 1.0
    %v275 = vmul.f32 %v274, %v190
    %v276 = vand.u32 2147483647, %v190
    %vm277 = vcmp.lt.f32.partialorder %v276, 0.0004427343
    %v278 = vsel %vm277, %v275, %v272
    %v279 = vadd.f32 %v192, 1.0
    %v280 = vlog2.pop %v279
    %v281 = vmul.f32 %v280, 0.6931472
    %v282 = vmul.f32 -0.5, %v192
    %v283 = vadd.f32 %v282, 1.0
    %v284 = vmul.f32 %v283, %v192
    %v285 = vand.u32 2147483647, %v192
    %vm286 = vcmp.lt.f32.partialorder %v285, 0.0004427343
    %v287 = vsel %vm286, %v284, %v281
    %v288 = vadd.f32 %v194, 1.0
    %v289 = vlog2.pop %v288
    %v290 = vmul.f32 %v289, 0.6931472
    %v291 = vmul.f32 -0.5, %v194
    %v292 = vadd.f32 %v291, 1.0
    %v293 = vmul.f32 %v292, %v194
    %v294 = vand.u32 2147483647, %v194
    %vm295 = vcmp.lt.f32.partialorder %v294, 0.0004427343
    %v296 = vsel %vm295, %v293, %v290
    %v297 = vadd.f32 %v196, 1.0
    %v298 = vlog2.pop %v297
    %v299 = vmul.f32 %v298, 0.6931472
    %v300 = vmul.f32 -0.5, %v196
    %v301 = vadd.f32 %v300, 1.0
    %v302 = vmul.f32 %v301, %v196
    %v303 = vand.u32 2147483647, %v196
    %vm304 = vcmp.lt.f32.partialorder %v303, 0.0004427343
    %v305 = vsel %vm304, %v302, %v299
    %v306 = vadd.f32 %v198, 1.0
    %v307 = vlog2.pop %v306
    %v308 = vmul.f32 %v307, 0.6931472
    %v309 = vmul.f32 -0.5, %v198
    %v310 = vadd.f32 %v309, 1.0
    %v311 = vmul.f32 %v310, %v198
    %v312 = vand.u32 2147483647, %v198
    %vm313 = vcmp.lt.f32.partialorder %v312, 0.0004427343
    %v314 = vsel %vm313, %v311, %v308
    %v315 = vadd.f32 %v200, 1.0
    %v316 = vlog2.pop %v315
    %v317 = vmul.f32 %v316, 0.6931472
    %v318 = vmul.f32 -0.5, %v200
    %v319 = vadd.f32 %v318, 1.0
    %v320 = vmul.f32 %v319, %v200
    %v321 = vand.u32 2147483647, %v200
    %vm322 = vcmp.lt.f32.partialorder %v321, 0.0004427343
    %v323 = vsel %vm322, %v320, %v317
    %v324 = vadd.f32 %v202, 1.0
    %v325 = vlog2.pop %v324
    %v326 = vmul.f32 %v325, 0.6931472
    %v327 = vmul.f32 -0.5, %v202
    %v328 = vadd.f32 %v327, 1.0
    %v329 = vmul.f32 %v328, %v202
    %v330 = vand.u32 2147483647, %v202
    %vm331 = vcmp.lt.f32.partialorder %v330, 0.0004427343
    %v332 = vsel %vm331, %v329, %v326
    %v333 = vadd.f32 %v204, 1.0
    %v334 = vlog2.pop %v333
    %v335 = vmul.f32 %v334, 0.6931472
    %v336 = vmul.f32 -0.5, %v204
    %v337 = vadd.f32 %v336, 1.0
    %v338 = vmul.f32 %v337, %v204
    %v339 = vand.u32 2147483647, %v204
    %vm340 = vcmp.lt.f32.partialorder %v339, 0.0004427343
    %v341 = vsel %vm340, %v338, %v335
    %v342 = vadd.f32 %v206, 1.0
    %v343 = vlog2.pop %v342
    %v344 = vmul.f32 %v343, 0.6931472
    %v345 = vmul.f32 -0.5, %v206
    %v346 = vadd.f32 %v345, 1.0
    %v347 = vmul.f32 %v346, %v206
    %v348 = vand.u32 2147483647, %v206
    %vm349 = vcmp.lt.f32.partialorder %v348, 0.0004427343
    %v350 = vsel %vm349, %v347, %v344
    %v351 = vadd.f32 %v127, %v215
    %v352 = vadd.f32 %v128, %v224
    %v353 = vadd.f32 %v129, %v233
    %v354 = vadd.f32 %v130, %v242
    %v355 = vadd.f32 %v131, %v251
    %v356 = vadd.f32 %v132, %v260
    %v357 = vadd.f32 %v133, %v269
    %v358 = vadd.f32 %v134, %v278
    %v359 = vadd.f32 %v135, %v287
    %v360 = vadd.f32 %v136, %v296
    %v361 = vadd.f32 %v137, %v305
    %v362 = vadd.f32 %v138, %v314
    %v363 = vadd.f32 %v139, %v323
    %v364 = vadd.f32 %v140, %v332
    %v365 = vadd.f32 %v141, %v341
    %v366 = vadd.f32 %v142, %v350
    %v367 = vld [vmem:[#allocation8] sm:$0xff]
    %v368 = vld [vmem:[#allocation8 + $0x8] sm:$0xff]
    %v369 = vld [vmem:[#allocation8 + $0x10] sm:$0xff]
    %v370 = vld [vmem:[#allocation8 + $0x18] sm:$0xff]
    %v371 = vld [vmem:[#allocation8 + $0x20] sm:$0xff]
    %v372 = vld [vmem:[#allocation8 + $0x28] sm:$0xff]
    %v373 = vld [vmem:[#allocation8 + $0x30] sm:$0xff]
    %v374 = vld [vmem:[#allocation8 + $0x38] sm:$0xff]
    %v375 = vld [vmem:[#allocation8 + $0x40] sm:$0xff]
    %v376 = vld [vmem:[#allocation8 + $0x48] sm:$0xff]
    %v377 = vld [vmem:[#allocation8 + $0x50] sm:$0xff]
    %v378 = vld [vmem:[#allocation8 + $0x58] sm:$0xff]
    %v379 = vld [vmem:[#allocation8 + $0x60] sm:$0xff]
    %v380 = vld [vmem:[#allocation8 + $0x68] sm:$0xff]
    %v381 = vld [vmem:[#allocation8 + $0x70] sm:$0xff]
    %v382 = vld [vmem:[#allocation8 + $0x78] sm:$0xff]
    %v383 = vmul.f32 %v351, %v367
    %v384 = vmul.f32 %v352, %v368
    %v385 = vmul.f32 %v353, %v369
    %v386 = vmul.f32 %v354, %v370
    %v387 = vmul.f32 %v355, %v371
    %v388 = vmul.f32 %v356, %v372
    %v389 = vmul.f32 %v357, %v373
    %v390 = vmul.f32 %v358, %v374
    %v391 = vmul.f32 %v359, %v375
    %v392 = vmul.f32 %v360, %v376
    %v393 = vmul.f32 %v361, %v377
    %v394 = vmul.f32 %v362, %v378
    %v395 = vmul.f32 %v363, %v379
    %v396 = vmul.f32 %v364, %v380
    %v397 = vmul.f32 %v365, %v381
    %v398 = vmul.f32 %v366, %v382
    %v399 = vadd.f32 %v95, %v383
    %v400 = vadd.f32 %v96, %v384
    %v401 = vadd.f32 %v97, %v385
    %v402 = vadd.f32 %v98, %v386
    %v403 = vadd.f32 %v99, %v387
    %v404 = vadd.f32 %v100, %v388
    %v405 = vadd.f32 %v101, %v389
    %v406 = vadd.f32 %v102, %v390
    %v407 = vadd.f32 %v103, %v391
    %v408 = vadd.f32 %v104, %v392
    %v409 = vadd.f32 %v105, %v393
    %v410 = vadd.f32 %v106, %v394
    %v411 = vadd.f32 %v107, %v395
    %v412 = vadd.f32 %v108, %v396
    %v413 = vadd.f32 %v109, %v397
    %v414 = vadd.f32 %v110, %v398
    %p415 = scmp.eq.s32.totalorder 0, 0
    // Predicated region
    $region42: #{tpu_custom_call.1} parent=1 // pred_check
      %p416 = pneg %p415
    $region43: #{tpu_custom_call.1} parent=1 // pred_check_branch
      %418 = sbr.rel (%p416) target = $region45
    $region44: #{tpu_custom_call.1} parent=1 // pred_region
      %v419 = vmul.f32 %v367, %v367
      %v420 = vmul.f32 %v368, %v368
      %v421 = vmul.f32 %v369, %v369
      %v422 = vmul.f32 %v370, %v370
      %v423 = vmul.f32 %v371, %v371
      %v424 = vmul.f32 %v372, %v372
      %v425 = vmul.f32 %v373, %v373
      %v426 = vmul.f32 %v374, %v374
      %v427 = vmul.f32 %v375, %v375
      %v428 = vmul.f32 %v376, %v376
      %v429 = vmul.f32 %v377, %v377
      %v430 = vmul.f32 %v378, %v378
      %v431 = vmul.f32 %v379, %v379
      %v432 = vmul.f32 %v380, %v380
      %v433 = vmul.f32 %v381, %v381
      %v434 = vmul.f32 %v382, %v382
      %v435 = vmul.f32 %v419, 0.5
      %v436 = vmul.f32 %v420, 0.5
      %v437 = vmul.f32 %v421, 0.5
      %v438 = vmul.f32 %v422, 0.5
      %v439 = vmul.f32 %v423, 0.5
      %v440 = vmul.f32 %v424, 0.5
      %v441 = vmul.f32 %v425, 0.5
      %v442 = vmul.f32 %v426, 0.5
      %v443 = vmul.f32 %v427, 0.5
      %v444 = vmul.f32 %v428, 0.5
      %v445 = vmul.f32 %v429, 0.5
      %v446 = vmul.f32 %v430, 0.5
      %v447 = vmul.f32 %v431, 0.5
      %v448 = vmul.f32 %v432, 0.5
      %v449 = vmul.f32 %v433, 0.5
      %v450 = vmul.f32 %v434, 0.5
      %v451 = vlog2.pop %v351
      %v452 = vmul.f32 %v451, 0.6931472
      %v453 = vlog2.pop %v352
      %v454 = vmul.f32 %v453, 0.6931472
      %v455 = vlog2.pop %v353
      %v456 = vmul.f32 %v455, 0.6931472
      %v457 = vlog2.pop %v354
      %v458 = vmul.f32 %v457, 0.6931472
      %v459 = vlog2.pop %v355
      %v460 = vmul.f32 %v459, 0.6931472
      %v461 = vlog2.pop %v356
      %v462 = vmul.f32 %v461, 0.6931472
      %v463 = vlog2.pop %v357
      %v464 = vmul.f32 %v463, 0.6931472
      %v465 = vlog2.pop %v358
      %v466 = vmul.f32 %v465, 0.6931472
      %v467 = vlog2.pop %v359
      %v468 = vmul.f32 %v467, 0.6931472
      %v469 = vlog2.pop %v360
      %v470 = vmul.f32 %v469, 0.6931472
      %v471 = vlog2.pop %v361
      %v472 = vmul.f32 %v471, 0.6931472
      %v473 = vlog2.pop %v362
      %v474 = vmul.f32 %v473, 0.6931472
      %v475 = vlog2.pop %v363
      %v476 = vmul.f32 %v475, 0.6931472
      %v477 = vlog2.pop %v364
      %v478 = vmul.f32 %v477, 0.6931472
      %v479 = vlog2.pop %v365
      %v480 = vmul.f32 %v479, 0.6931472
      %v481 = vlog2.pop %v366
      %v482 = vmul.f32 %v481, 0.6931472
      %v483 = vsub.f32 -0.9189385, %v452
      %v484 = vsub.f32 -0.9189385, %v454
      %v485 = vsub.f32 -0.9189385, %v456
      %v486 = vsub.f32 -0.9189385, %v458
      %v487 = vsub.f32 -0.9189385, %v460
      %v488 = vsub.f32 -0.9189385, %v462
      %v489 = vsub.f32 -0.9189385, %v464
      %v490 = vsub.f32 -0.9189385, %v466
      %v491 = vsub.f32 -0.9189385, %v468
      %v492 = vsub.f32 -0.9189385, %v470
      %v493 = vsub.f32 -0.9189385, %v472
      %v494 = vsub.f32 -0.9189385, %v474
      %v495 = vsub.f32 -0.9189385, %v476
      %v496 = vsub.f32 -0.9189385, %v478
      %v497 = vsub.f32 -0.9189385, %v480
      %v498 = vsub.f32 -0.9189385, %v482
      %v499 = vsub.f32 %v483, %v435
      %v500 = vsub.f32 %v484, %v436
      %v501 = vsub.f32 %v485, %v437
      %v502 = vsub.f32 %v486, %v438
      %v503 = vsub.f32 %v487, %v439
      %v504 = vsub.f32 %v488, %v440
      %v505 = vsub.f32 %v489, %v441
      %v506 = vsub.f32 %v490, %v442
      %v507 = vsub.f32 %v491, %v443
      %v508 = vsub.f32 %v492, %v444
      %v509 = vsub.f32 %v493, %v445
      %v510 = vsub.f32 %v494, %v446
      %v511 = vsub.f32 %v495, %v447
      %v512 = vsub.f32 %v496, %v448
      %v513 = vsub.f32 %v497, %v449
      %v514 = vsub.f32 %v498, %v450
      %v515 = vmul.f32 %v399, %v399
      %v516 = vmul.f32 %v400, %v400
      %v517 = vmul.f32 %v401, %v401
      %v518 = vmul.f32 %v402, %v402
      %v519 = vmul.f32 %v403, %v403
      %v520 = vmul.f32 %v404, %v404
      %v521 = vmul.f32 %v405, %v405
      %v522 = vmul.f32 %v406, %v406
      %v523 = vmul.f32 %v407, %v407
      %v524 = vmul.f32 %v408, %v408
      %v525 = vmul.f32 %v409, %v409
      %v526 = vmul.f32 %v410, %v410
      %v527 = vmul.f32 %v411, %v411
      %v528 = vmul.f32 %v412, %v412
      %v529 = vmul.f32 %v413, %v413
      %v530 = vmul.f32 %v414, %v414
      %v531 = vmul.f32 %v515, 0.5
      %v532 = vmul.f32 %v516, 0.5
      %v533 = vmul.f32 %v517, 0.5
      %v534 = vmul.f32 %v518, 0.5
      %v535 = vmul.f32 %v519, 0.5
      %v536 = vmul.f32 %v520, 0.5
      %v537 = vmul.f32 %v521, 0.5
      %v538 = vmul.f32 %v522, 0.5
      %v539 = vmul.f32 %v523, 0.5
      %v540 = vmul.f32 %v524, 0.5
      %v541 = vmul.f32 %v525, 0.5
      %v542 = vmul.f32 %v526, 0.5
      %v543 = vmul.f32 %v527, 0.5
      %v544 = vmul.f32 %v528, 0.5
      %v545 = vmul.f32 %v529, 0.5
      %v546 = vmul.f32 %v530, 0.5
      %v547 = vsub.f32 -1.6120857, %v531
      %v548 = vsub.f32 -1.6120857, %v532
      %v549 = vsub.f32 -1.6120857, %v533
      %v550 = vsub.f32 -1.6120857, %v534
      %v551 = vsub.f32 -1.6120857, %v535
      %v552 = vsub.f32 -1.6120857, %v536
      %v553 = vsub.f32 -1.6120857, %v537
      %v554 = vsub.f32 -1.6120857, %v538
      %v555 = vsub.f32 -1.6120857, %v539
      %v556 = vsub.f32 -1.6120857, %v540
      %v557 = vsub.f32 -1.6120857, %v541
      %v558 = vsub.f32 -1.6120857, %v542
      %v559 = vsub.f32 -1.6120857, %v543
      %v560 = vsub.f32 -1.6120857, %v544
      %v561 = vsub.f32 -1.6120857, %v545
      %v562 = vsub.f32 -1.6120857, %v546
      %v563 = vmul.f32 %v515, -81376.9
      %v564 = vmul.f32 %v516, -81376.9
      %v565 = vmul.f32 %v517, -81376.9
      %v566 = vmul.f32 %v518, -81376.9
      %v567 = vmul.f32 %v519, -81376.9
      %v568 = vmul.f32 %v520, -81376.9
      %v569 = vmul.f32 %v521, -81376.9
      %v570 = vmul.f32 %v522, -81376.9
      %v571 = vmul.f32 %v523, -81376.9
      %v572 = vmul.f32 %v524, -81376.9
      %v573 = vmul.f32 %v525, -81376.9
      %v574 = vmul.f32 %v526, -81376.9
      %v575 = vmul.f32 %v527, -81376.9
      %v576 = vmul.f32 %v528, -81376.9
      %v577 = vmul.f32 %v529, -81376.9
      %v578 = vmul.f32 %v530, -81376.9
      %v579 = vadd.f32 %v563, 6.0
      %v580 = vadd.f32 %v564, 6.0
      %v581 = vadd.f32 %v565, 6.0
      %v582 = vadd.f32 %v566, 6.0
      %v583 = vadd.f32 %v567, 6.0
      %v584 = vadd.f32 %v568, 6.0
      %v585 = vadd.f32 %v569, 6.0
      %v586 = vadd.f32 %v570, 6.0
      %v587 = vadd.f32 %v571, 6.0
      %v588 = vadd.f32 %v572, 6.0
      %v589 = vadd.f32 %v573, 6.0
      %v590 = vadd.f32 %v574, 6.0
      %v591 = vadd.f32 %v575, 6.0
      %v592 = vadd.f32 %v576, 6.0
      %v593 = vadd.f32 %v577, 6.0
      %v594 = vadd.f32 %v578, 6.0
      %v595 = vmul.f32 %v579, 1.442695
      %v596 = vpow.pop %v595
      %v597 = vmul.f32 %v580, 1.442695
      %v598 = vpow.pop %v597
      %v599 = vmul.f32 %v581, 1.442695
      %v600 = vpow.pop %v599
      %v601 = vmul.f32 %v582, 1.442695
      %v602 = vpow.pop %v601
      %v603 = vmul.f32 %v583, 1.442695
      %v604 = vpow.pop %v603
      %v605 = vmul.f32 %v584, 1.442695
      %v606 = vpow.pop %v605
      %v607 = vmul.f32 %v585, 1.442695
      %v608 = vpow.pop %v607
      %v609 = vmul.f32 %v586, 1.442695
      %v610 = vpow.pop %v609
      %v611 = vmul.f32 %v587, 1.442695
      %v612 = vpow.pop %v611
      %v613 = vmul.f32 %v588, 1.442695
      %v614 = vpow.pop %v613
      %v615 = vmul.f32 %v589, 1.442695
      %v616 = vpow.pop %v615
      %v617 = vmul.f32 %v590, 1.442695
      %v618 = vpow.pop %v617
      %v619 = vmul.f32 %v591, 1.442695
      %v620 = vpow.pop %v619
      %v621 = vmul.f32 %v592, 1.442695
      %v622 = vpow.pop %v621
      %v623 = vmul.f32 %v593, 1.442695
      %v624 = vpow.pop %v623
      %v625 = vmul.f32 %v594, 1.442695
      %v626 = vpow.pop %v625
      %v627 = vadd.f32 %v596, 1.0
      %v628 = vlog2.pop %v627
      %v629 = vmul.f32 %v628, 0.6931472
      %v630 = vmul.f32 -0.5, %v596
      %v631 = vadd.f32 %v630, 1.0
      %v632 = vmul.f32 %v631, %v596
      %v633 = vand.u32 2147483647, %v596
      %vm634 = vcmp.lt.f32.partialorder %v633, 0.0004427343
      %v635 = vsel %vm634, %v632, %v629
      %v636 = vadd.f32 %v598, 1.0
      %v637 = vlog2.pop %v636
      %v638 = vmul.f32 %v637, 0.6931472
      %v639 = vmul.f32 -0.5, %v598
      %v640 = vadd.f32 %v639, 1.0
      %v641 = vmul.f32 %v640, %v598
      %v642 = vand.u32 2147483647, %v598
      %vm643 = vcmp.lt.f32.partialorder %v642, 0.0004427343
      %v644 = vsel %vm643, %v641, %v638
      %v645 = vadd.f32 %v600, 1.0
      %v646 = vlog2.pop %v645
      %v647 = vmul.f32 %v646, 0.6931472
      %v648 = vmul.f32 -0.5, %v600
      %v649 = vadd.f32 %v648, 1.0
      %v650 = vmul.f32 %v649, %v600
      %v651 = vand.u32 2147483647, %v600
      %vm652 = vcmp.lt.f32.partialorder %v651, 0.0004427343
      %v653 = vsel %vm652, %v650, %v647
      %v654 = vadd.f32 %v602, 1.0
      %v655 = vlog2.pop %v654
      %v656 = vmul.f32 %v655, 0.6931472
      %v657 = vmul.f32 -0.5, %v602
      %v658 = vadd.f32 %v657, 1.0
      %v659 = vmul.f32 %v658, %v602
      %v660 = vand.u32 2147483647, %v602
      %vm661 = vcmp.lt.f32.partialorder %v660, 0.0004427343
      %v662 = vsel %vm661, %v659, %v656
      %v663 = vadd.f32 %v604, 1.0
      %v664 = vlog2.pop %v663
      %v665 = vmul.f32 %v664, 0.6931472
      %v666 = vmul.f32 -0.5, %v604
      %v667 = vadd.f32 %v666, 1.0
      %v668 = vmul.f32 %v667, %v604
      %v669 = vand.u32 2147483647, %v604
      %vm670 = vcmp.lt.f32.partialorder %v669, 0.0004427343
      %v671 = vsel %vm670, %v668, %v665
      %v672 = vadd.f32 %v606, 1.0
      %v673 = vlog2.pop %v672
      %v674 = vmul.f32 %v673, 0.6931472
      %v675 = vmul.f32 -0.5, %v606
      %v676 = vadd.f32 %v675, 1.0
      %v677 = vmul.f32 %v676, %v606
      %v678 = vand.u32 2147483647, %v606
      %vm679 = vcmp.lt.f32.partialorder %v678, 0.0004427343
      %v680 = vsel %vm679, %v677, %v674
      %v681 = vadd.f32 %v608, 1.0
      %v682 = vlog2.pop %v681
      %v683 = vmul.f32 %v682, 0.6931472
      %v684 = vmul.f32 -0.5, %v608
      %v685 = vadd.f32 %v684, 1.0
      %v686 = vmul.f32 %v685, %v608
      %v687 = vand.u32 2147483647, %v608
      %vm688 = vcmp.lt.f32.partialorder %v687, 0.0004427343
      %v689 = vsel %vm688, %v686, %v683
      %v690 = vadd.f32 %v610, 1.0
      %v691 = vlog2.pop %v690
      %v692 = vmul.f32 %v691, 0.6931472
      %v693 = vmul.f32 -0.5, %v610
      %v694 = vadd.f32 %v693, 1.0
      %v695 = vmul.f32 %v694, %v610
      %v696 = vand.u32 2147483647, %v610
      %vm697 = vcmp.lt.f32.partialorder %v696, 0.0004427343
      %v698 = vsel %vm697, %v695, %v692
      %v699 = vadd.f32 %v612, 1.0
      %v700 = vlog2.pop %v699
      %v701 = vmul.f32 %v700, 0.6931472
      %v702 = vmul.f32 -0.5, %v612
      %v703 = vadd.f32 %v702, 1.0
      %v704 = vmul.f32 %v703, %v612
      %v705 = vand.u32 2147483647, %v612
      %vm706 = vcmp.lt.f32.partialorder %v705, 0.0004427343
      %v707 = vsel %vm706, %v704, %v701
      %v708 = vadd.f32 %v614, 1.0
      %v709 = vlog2.pop %v708
      %v710 = vmul.f32 %v709, 0.6931472
      %v711 = vmul.f32 -0.5, %v614
      %v712 = vadd.f32 %v711, 1.0
      %v713 = vmul.f32 %v712, %v614
      %v714 = vand.u32 2147483647, %v614
      %vm715 = vcmp.lt.f32.partialorder %v714, 0.0004427343
      %v716 = vsel %vm715, %v713, %v710
      %v717 = vadd.f32 %v616, 1.0
      %v718 = vlog2.pop %v717
      %v719 = vmul.f32 %v718, 0.6931472
      %v720 = vmul.f32 -0.5, %v616
      %v721 = vadd.f32 %v720, 1.0
      %v722 = vmul.f32 %v721, %v616
      %v723 = vand.u32 2147483647, %v616
      %vm724 = vcmp.lt.f32.partialorder %v723, 0.0004427343
      %v725 = vsel %vm724, %v722, %v719
      %v726 = vadd.f32 %v618, 1.0
      %v727 = vlog2.pop %v726
      %v728 = vmul.f32 %v727, 0.6931472
      %v729 = vmul.f32 -0.5, %v618
      %v730 = vadd.f32 %v729, 1.0
      %v731 = vmul.f32 %v730, %v618
      %v732 = vand.u32 2147483647, %v618
      %vm733 = vcmp.lt.f32.partialorder %v732, 0.0004427343
      %v734 = vsel %vm733, %v731, %v728
      %v735 = vadd.f32 %v620, 1.0
      %v736 = vlog2.pop %v735
      %v737 = vmul.f32 %v736, 0.6931472
      %v738 = vmul.f32 -0.5, %v620
      %v739 = vadd.f32 %v738, 1.0
      %v740 = vmul.f32 %v739, %v620
      %v741 = vand.u32 2147483647, %v620
      %vm742 = vcmp.lt.f32.partialorder %v741, 0.0004427343
      %v743 = vsel %vm742, %v740, %v737
      %v744 = vadd.f32 %v622, 1.0
      %v745 = vlog2.pop %v744
      %v746 = vmul.f32 %v745, 0.6931472
      %v747 = vmul.f32 -0.5, %v622
      %v748 = vadd.f32 %v747, 1.0
      %v749 = vmul.f32 %v748, %v622
      %v750 = vand.u32 2147483647, %v622
      %vm751 = vcmp.lt.f32.partialorder %v750, 0.0004427343
      %v752 = vsel %vm751, %v749, %v746
      %v753 = vadd.f32 %v624, 1.0
      %v754 = vlog2.pop %v753
      %v755 = vmul.f32 %v754, 0.6931472
      %v756 = vmul.f32 -0.5, %v624
      %v757 = vadd.f32 %v756, 1.0
      %v758 = vmul.f32 %v757, %v624
      %v759 = vand.u32 2147483647, %v624
      %vm760 = vcmp.lt.f32.partialorder %v759, 0.0004427343
      %v761 = vsel %vm760, %v758, %v755
      %v762 = vadd.f32 %v626, 1.0
      %v763 = vlog2.pop %v762
      %v764 = vmul.f32 %v763, 0.6931472
      %v765 = vmul.f32 -0.5, %v626
      %v766 = vadd.f32 %v765, 1.0
      %v767 = vmul.f32 %v766, %v626
      %v768 = vand.u32 2147483647, %v626
      %vm769 = vcmp.lt.f32.partialorder %v768, 0.0004427343
      %v770 = vsel %vm769, %v767, %v764
      %v771 = vadd.f32 %v547, %v635
      %v772 = vadd.f32 %v548, %v644
      %v773 = vadd.f32 %v549, %v653
      %v774 = vadd.f32 %v550, %v662
      %v775 = vadd.f32 %v551, %v671
      %v776 = vadd.f32 %v552, %v680
      %v777 = vadd.f32 %v553, %v689
      %v778 = vadd.f32 %v554, %v698
      %v779 = vadd.f32 %v555, %v707
      %v780 = vadd.f32 %v556, %v716
      %v781 = vadd.f32 %v557, %v725
      %v782 = vadd.f32 %v558, %v734
      %v783 = vadd.f32 %v559, %v743
      %v784 = vadd.f32 %v560, %v752
      %v785 = vadd.f32 %v561, %v761
      %v786 = vadd.f32 %v562, %v770
      %s787 = smul.u32 0, 128
      %v788 = vlaneseq
      %v789 = vshrl.u32 %v788, 7
      %v790 = vadd.s32 %v789, 8
      %v791 = vadd.s32 %v789, 16
      %v792 = vadd.s32 %v789, 24
      %v793 = vadd.s32 %v789, 32
      %v794 = vadd.s32 %v789, 40
      %v795 = vadd.s32 %v789, 48
      %v796 = vadd.s32 %v789, 56
      %v797 = vadd.s32 %v789, 64
      %v798 = vadd.s32 %v789, 72
      %v799 = vadd.s32 %v789, 80
      %v800 = vadd.s32 %v789, 88
      %v801 = vadd.s32 %v789, 96
      %v802 = vadd.s32 %v789, 104
      %v803 = vadd.s32 %v789, 112
      %v804 = vadd.s32 %v789, 120
      %v805 = vstv %s787
      %v806 = vadd.s32 %v805, %v789
      %v807 = vadd.s32 %v805, %v790
      %v808 = vadd.s32 %v805, %v791
      %v809 = vadd.s32 %v805, %v792
      %v810 = vadd.s32 %v805, %v793
      %v811 = vadd.s32 %v805, %v794
      %v812 = vadd.s32 %v805, %v795
      %v813 = vadd.s32 %v805, %v796
      %v814 = vadd.s32 %v805, %v797
      %v815 = vadd.s32 %v805, %v798
      %v816 = vadd.s32 %v805, %v799
      %v817 = vadd.s32 %v805, %v800
      %v818 = vadd.s32 %v805, %v801
      %v819 = vadd.s32 %v805, %v802
      %v820 = vadd.s32 %v805, %v803
      %v821 = vadd.s32 %v805, %v804
      %vm822 = vcmp.lt.s32.totalorder %v806, 16
      %vm823 = vcmp.lt.s32.totalorder %v807, 16
      %vm824 = vcmp.lt.s32.totalorder %v808, 16
      %vm825 = vcmp.lt.s32.totalorder %v809, 16
      %vm826 = vcmp.lt.s32.totalorder %v810, 16
      %vm827 = vcmp.lt.s32.totalorder %v811, 16
      %vm828 = vcmp.lt.s32.totalorder %v812, 16
      %vm829 = vcmp.lt.s32.totalorder %v813, 16
      %vm830 = vcmp.lt.s32.totalorder %v814, 16
      %vm831 = vcmp.lt.s32.totalorder %v815, 16
      %vm832 = vcmp.lt.s32.totalorder %v816, 16
      %vm833 = vcmp.lt.s32.totalorder %v817, 16
      %vm834 = vcmp.lt.s32.totalorder %v818, 16
      %vm835 = vcmp.lt.s32.totalorder %v819, 16
      %vm836 = vcmp.lt.s32.totalorder %v820, 16
      %vm837 = vcmp.lt.s32.totalorder %v821, 16
      %s838 = smul.u32 0, 128
      %v839 = vlaneseq
      %v840 = vand.u32 %v839, 127
      %v841 = vstv %s838
      %v842 = vadd.s32 %v841, %v840
      %vm843 = vcmp.lt.s32.totalorder %v842, 32
      %vm844 = vmand %vm822, %vm843
      %vm845 = vmand %vm823, %vm843
      %vm846 = vmand %vm824, %vm843
      %vm847 = vmand %vm825, %vm843
      %vm848 = vmand %vm826, %vm843
      %vm849 = vmand %vm827, %vm843
      %vm850 = vmand %vm828, %vm843
      %vm851 = vmand %vm829, %vm843
      %vm852 = vmand %vm830, %vm843
      %vm853 = vmand %vm831, %vm843
      %vm854 = vmand %vm832, %vm843
      %vm855 = vmand %vm833, %vm843
      %vm856 = vmand %vm834, %vm843
      %vm857 = vmand %vm835, %vm843
      %vm858 = vmand %vm836, %vm843
      %vm859 = vmand %vm837, %vm843
      %v860 = vsel %vm844, %v499, 0.0
      %v861 = vsel %vm845, %v500, 0.0
      %v862 = vsel %vm846, %v501, 0.0
      %v863 = vsel %vm847, %v502, 0.0
      %v864 = vsel %vm848, %v503, 0.0
      %v865 = vsel %vm849, %v504, 0.0
      %v866 = vsel %vm850, %v505, 0.0
      %v867 = vsel %vm851, %v506, 0.0
      %v868 = vsel %vm852, %v507, 0.0
      %v869 = vsel %vm853, %v508, 0.0
      %v870 = vsel %vm854, %v509, 0.0
      %v871 = vsel %vm855, %v510, 0.0
      %v872 = vsel %vm856, %v511, 0.0
      %v873 = vsel %vm857, %v512, 0.0
      %v874 = vsel %vm858, %v513, 0.0
      %v875 = vsel %vm859, %v514, 0.0
      %v876 = vsel %vm844, %v771, 0.0
      %v877 = vsel %vm845, %v772, 0.0
      %v878 = vsel %vm846, %v773, 0.0
      %v879 = vsel %vm847, %v774, 0.0
      %v880 = vsel %vm848, %v775, 0.0
      %v881 = vsel %vm849, %v776, 0.0
      %v882 = vsel %vm850, %v777, 0.0
      %v883 = vsel %vm851, %v778, 0.0
      %v884 = vsel %vm852, %v779, 0.0
      %v885 = vsel %vm853, %v780, 0.0
      %v886 = vsel %vm854, %v781, 0.0
      %v887 = vsel %vm855, %v782, 0.0
      %v888 = vsel %vm856, %v783, 0.0
      %v889 = vsel %vm857, %v784, 0.0
      %v890 = vsel %vm858, %v785, 0.0
      %v891 = vsel %vm859, %v786, 0.0
      %v892 = vld [vmem:[#allocation11] sm:$0xff]
      %v893 = vadd.f32 %v876, %v877
      %v894 = vadd.f32 %v878, %v879
      %v895 = vadd.f32 %v880, %v881
      %v896 = vadd.f32 %v882, %v883
      %v897 = vadd.f32 %v884, %v885
      %v898 = vadd.f32 %v886, %v887
      %v899 = vadd.f32 %v888, %v889
      %v900 = vadd.f32 %v890, %v891
      %v901 = vadd.f32 %v893, %v894
      %v902 = vadd.f32 %v895, %v896
      %v903 = vadd.f32 %v897, %v898
      %v904 = vadd.f32 %v899, %v900
      %v905 = vadd.f32 %v901, %v902
      %v906 = vadd.f32 %v903, %v904
      %v907 = vadd.f32 %v905, %v906
      %v908 = vadd.f32 %v892, %v907
      %909 = vst [vmem:[#allocation11] sm:$0xff] %v908
      %v910 = vld [vmem:[#allocation13] sm:$0xff]
      %v911 = vadd.f32 %v860, %v861
      %v912 = vadd.f32 %v862, %v863
      %v913 = vadd.f32 %v864, %v865
      %v914 = vadd.f32 %v866, %v867
      %v915 = vadd.f32 %v868, %v869
      %v916 = vadd.f32 %v870, %v871
      %v917 = vadd.f32 %v872, %v873
      %v918 = vadd.f32 %v874, %v875
      %v919 = vadd.f32 %v911, %v912
      %v920 = vadd.f32 %v913, %v914
      %v921 = vadd.f32 %v915, %v916
      %v922 = vadd.f32 %v917, %v918
      %v923 = vadd.f32 %v919, %v920
      %v924 = vadd.f32 %v921, %v922
      %v925 = vadd.f32 %v923, %v924
      %v926 = vadd.f32 %v910, %v925
      %927 = vst [vmem:[#allocation13] sm:$0xff] %v926
    $region45: #{tpu_custom_call.1} parent=1 // pred_fallthru
      _
    %v928 = vld [vmem:[#allocation2] sm:$0xf]
    %v929 = vld [vmem:[#allocation10] sm:$0xff]
    %v930 = vpack.c.bf16 %v400, %v399
    %v931 = vpack.c.bf16 %v402, %v401
    %v932 = vpack.c.bf16 %v404, %v403
    %v933 = vpack.c.bf16 %v406, %v405
    %v934 = vpack.c.bf16 %v408, %v407
    %v935 = vpack.c.bf16 %v410, %v409
    %v936 = vpack.c.bf16 %v412, %v411
    %v937 = vpack.c.bf16 %v414, %v413
    %938 = vmatpush.bf16.xpose.msra.mxu0 %v937
    %939 = vmatpush.bf16.xpose.msra.mxu0 %v936
    %940 = vmatpush.bf16.xpose.msra.mxu0 %v935
    %941 = vmatpush.bf16.xpose.msra.mxu0 %v934
    %942 = vmatpush.bf16.xpose.msra.mxu0 %v933
    %943 = vmatpush.bf16.xpose.msra.mxu0 %v932
    %944 = vmatpush.bf16.xpose.msra.mxu0 %v931
    %945 = vmatpush.bf16.xpose.msra.mxu0 %v930
    %946 = vmatmul.bf16.gmra.mxu0 %v928
    %v947 = vpop.f32.mrf.mxu0
    %v948 = vadd.f32 0.0, %v947
    %v949 = vpop.f32.mrf.mxu0
    %950 = vdwg.mxu0
    %v951 = vadd.f32 %v929, %v948
    %952 = vst [vmem:[#allocation10] sm:$0xff] %v951
    // Predicated region
    $region46: #{tpu_custom_call.1} parent=1 // pred_check
      %p953 = pneg %p88
    $region47: #{tpu_custom_call.1} parent=1 // pred_check_branch
      %955 = sbr.rel (%p953) target = $region49
    $region48: #{tpu_custom_call.1} parent=1 // pred_region
      %v956 = vld [vmem:[#allocation10] sm:$0xff]
      %v957 = vld [vmem:[%s4] sm:$0x1]
      %v959 = vperm.slane %v957, 0
      %v961 = vadd.f32 %v956, %v959
      %962 = vst [vmem:[#allocation10] sm:$0xff] %v961
    $region49: #{tpu_custom_call.1} parent=1 // pred_fallthru
      _
    // Predicated region
    $region50: #{tpu_custom_call.1} parent=1 // pred_check
      _
    $region51: #{tpu_custom_call.1} parent=1 // pred_check_branch
      %964 = sbr.rel (0) target = $region53
    $region52: #{tpu_custom_call.1} parent=1 // pred_region
      %966 = vsyncadd [#allocation4], 0
      %s968 = sshll.u32 [#allocation10], 4
      %s969 = int_to_ptr.vmem [resolvable:$true] %s968
      %s970 = sshll.u32 %s5, 4
      %s971 = int_to_ptr.hbm [resolvable:$true] %s970
      %973 = dma.vmem_to_hbm [thread:$0]  %s969, 128, %s971, [#allocation4]
    $region53: #{tpu_custom_call.1} parent=1 // pred_fallthru
      _
    // Predicated region
    $region54: #{tpu_custom_call.1} parent=1 // pred_check
      _
    $region55: #{tpu_custom_call.1} parent=1 // pred_check_branch
      %975 = sbr.rel (0) target = $region57
    $region56: #{tpu_custom_call.1} parent=1 // pred_region
      %s976 = sadd.s32 0, 0
      %978 = vsyncadd [#allocation12], 0
      %s979 = smul.addr %s976, 8
      %s980 = scalar_lea.hbm %s6, %s979
      %s982 = sshll.u32 [#allocation11], 4
      %s983 = int_to_ptr.vmem [resolvable:$true] %s982
      %s984 = sshll.u32 %s980, 4
      %s985 = int_to_ptr.hbm [resolvable:$true] %s984
      %987 = dma.vmem_to_hbm [thread:$0]  %s983, 128, %s985, [#allocation12]
    $region57: #{tpu_custom_call.1} parent=1 // pred_fallthru
      _
    // Predicated region
    $region58: #{tpu_custom_call.1} parent=1 // pred_check
      _
    $region59: #{tpu_custom_call.1} parent=1 // pred_check_branch
      %989 = sbr.rel (0) target = $region61
    $region60: #{tpu_custom_call.1} parent=1 // pred_region
      %s990 = sadd.s32 0, 0
      %992 = vsyncadd [#allocation12], 0
      %s993 = smul.addr %s990, 8
      %s994 = scalar_lea.hbm %s7, %s993
      %s996 = sshll.u32 [#allocation13], 4
      %s997 = int_to_ptr.vmem [resolvable:$true] %s996
      %s998 = sshll.u32 %s994, 4
      %s999 = int_to_ptr.hbm [resolvable:$true] %s998
      %1001 = dma.vmem_to_hbm [thread:$0]  %s997, 128, %s999, [#allocation12]
    $region61: #{tpu_custom_call.1} parent=1 // pred_fallthru
      _
    // Predicated region
    $region62: #{tpu_custom_call.1} parent=1 // pred_check
      _
    $region63: #{tpu_custom_call.1} parent=1 // pred_check_branch
      %1003 = sbr.rel (0) target = $region65
    $region64: #{tpu_custom_call.1} parent=1 // pred_region
      %1005 = dma.done [#allocation4], 128
    $region65: #{tpu_custom_call.1} parent=1 // pred_fallthru
      _
    // Predicated region
    $region66: #{tpu_custom_call.1} parent=1 // pred_check
      _
    $region67: #{tpu_custom_call.1} parent=1 // pred_check_branch
      %1007 = sbr.rel (0) target = $region69
    $region68: #{tpu_custom_call.1} parent=1 // pred_region
      %1009 = dma.done [#allocation12], 128
    $region69: #{tpu_custom_call.1} parent=1 // pred_fallthru
      _
    // Predicated region
    $region70: #{tpu_custom_call.1} parent=1 // pred_check
      _
    $region71: #{tpu_custom_call.1} parent=1 // pred_check_branch
      %1011 = sbr.rel (0) target = $region73
    $region72: #{tpu_custom_call.1} parent=1 // pred_region
      %1013 = dma.done [#allocation12], 128
    $region73: #{tpu_custom_call.1} parent=1 // pred_fallthru
      _
    %1014 = vsyncpa [#allocation3], 1
    %1015 = vsyncpa [#allocation6], 1
    %1016 = vsyncpa [#allocation9], 1
    %1017 = vsyncpa [#allocation4], 1
    %1018 = vsyncpa [#allocation12], 1

</llo_original>
